<compile_context>
chip_gen: v7x
topology: tpu7x:2x2x1
jax: 0.10.0
libtpu: 0.0.40
codegen_flags: <defaults>
</compile_context>

<pallas_src>
import functools

import jax
import jax.numpy as jnp
from jax.experimental import pallas as pl
from jax.experimental.pallas import tpu as pltpu


def _round_up(x, m):
    return ((x + m - 1) // m) * m


def multitask_kernel(x_ref, w1_ref, b1_ref, w2_ref, b2_ref, feat_ref, emb_ref):
    """features = relu(x @ W1 + b1); embeddings = features @ W2 + b2.

    x is cast to bf16 in-register (no wrapper cast pass); W1/W2 arrive bf16;
    accumulation, bias-add and ReLU are f32; stores are f32.
    """
    x = x_ref[...].astype(jnp.bfloat16)              # [TILE_N, F_in]

    h = jnp.dot(x, w1_ref[...], preferred_element_type=jnp.float32) + b1_ref[...]
    features = jnp.maximum(h, 0.0)                   # f32 [TILE_N, C]
    feat_ref[...] = features.astype(feat_ref.dtype)  # exact width C (no zero pad)

    emb = jnp.dot(features.astype(jnp.bfloat16), w2_ref[...],
                  preferred_element_type=jnp.float32) + b2_ref[...]
    emb_ref[...] = emb.astype(emb_ref.dtype)         # f32 [TILE_N, E]


@functools.partial(jax.jit, static_argnames=("tile_n",))
def multitask_forward(x, w1, b1, w2, b2, *, tile_n=512):
    """Row-tiled, weight-resident fused forward.

    x  : [N, F_in]  (f32 or bf16 — cast to bf16 inside the kernel)
    w1 : [F_in, C] bf16, b1 : [1, C] f32   -- synthetic graph_net Linear
    w2 : [C, E]    bf16, b2 : [1, E] f32   -- self.embedding = nn.Linear(C, E)
    returns (features [N, C] f32, embeddings [N, E] f32)
    """
    N, F_in = x.shape
    C = w1.shape[1]
    E = w2.shape[1]

    # Row tile: multiple of 8, and small enough that the grid has >= 2 steps
    # whenever N allows it (v7x has 2 TensorCores to shard the row axis over).
    tile_n = min(tile_n, _round_up(pl.cdiv(N, 2), 8))
    tile_n = max(tile_n, 8)
    N_pad = _round_up(N, tile_n)

    # Only pad rows when strictly needed (demo shapes need no padding at all).
    x_in = x if N_pad == N else jnp.pad(x, ((0, N_pad - N), (0, 0)))

    grid = (N_pad // tile_n,)

    flops = 2 * N_pad * (F_in * C + C * E)
    bytes_accessed = (
        x_in.size * x_in.dtype.itemsize
        + w1.size * 2 + w2.size * 2            # bf16 resident weights
        + b1.size * 4 + b2.size * 4            # f32 biases
        + N_pad * C * 4 + N_pad * E * 4        # f32 outputs
    )

    feat, emb = pl.pallas_call(
        multitask_kernel,
        out_shape=(
            jax.ShapeDtypeStruct((N_pad, C), jnp.float32),
            jax.ShapeDtypeStruct((N_pad, E), jnp.float32),
        ),
        grid=grid,
        in_specs=[
            pl.BlockSpec((tile_n, F_in), lambda i: (i, 0)),   # x: streamed
            pl.BlockSpec((F_in, C), lambda i: (0, 0)),        # w1: resident
            pl.BlockSpec((1, C), lambda i: (0, 0)),           # b1: resident
            pl.BlockSpec((C, E), lambda i: (0, 0)),           # w2: resident
            pl.BlockSpec((1, E), lambda i: (0, 0)),           # b2: resident
        ],
        out_specs=(
            pl.BlockSpec((tile_n, C), lambda i: (i, 0)),      # features (exact C)
            pl.BlockSpec((tile_n, E), lambda i: (i, 0)),      # embeddings
        ),
        compiler_params=pltpu.CompilerParams(
            dimension_semantics=("parallel",),                # v7x: 2 TCs share rows
        ),
        cost_estimate=pl.CostEstimate(
            flops=flops, transcendentals=0, bytes_accessed=bytes_accessed),
    )(x_in, w1, b1, w2, b2)

    if N_pad != N:
        feat = feat[:N]
        emb = emb[:N]
    return feat, emb


def init_params(key, in_features, out_channels, embedding_dim):
    """f32 parameters (torch-equivalent reference weights)."""
    k1, k2, k3, k4 = jax.random.split(key, 4)
    # graph_net (synthetic Linear): W1 [in, out_channels], b1 [1, out_channels]
    w1 = jax.random.normal(k1, (in_features, out_channels), jnp.float32) * 0.05
    b1 = jax.random.normal(k2, (1, out_channels), jnp.float32) * 0.01
    # embedding = nn.Linear(out_channels, embedding_dim)
    w2 = jax.random.normal(k3, (out_channels, embedding_dim), jnp.float32) * 0.05
    b2 = jax.random.normal(k4, (1, embedding_dim), jnp.float32) * 0.01
    return w1, b1, w2, b2


def prepare_params(w1, b1, w2, b2):
    """One-time cast to kernel-ready dtypes (do NOT repeat per forward call)."""
    return (w1.astype(jnp.bfloat16), b1.astype(jnp.float32),
            w2.astype(jnp.bfloat16), b2.astype(jnp.float32))


if __name__ == "__main__":
    # Shapes consistent with the module's forward pass; N chosen so the
    # row-tiled grid has 2 steps and needs no row padding.
    N = 1024              # number of nodes / batch rows
    in_features = 32      # graph_net input feature dim
    out_channels = 64     # graph_net.out_channels
    embedding_dim = 128   # default embedding_dim in __init__

    key = jax.random.PRNGKey(0)
    kx, kp = jax.random.split(key)
    x = jax.random.normal(kx, (N, in_features), jnp.float32)
    w1, b1, w2, b2 = init_params(kp, in_features, out_channels, embedding_dim)

    # Cast weights once, outside the per-call path.
    kw1, kb1, kw2, kb2 = jax.block_until_ready(prepare_params(w1, b1, w2, b2))

    features, embeddings = multitask_forward(x, kw1, kb1, kw2, kb2, tile_n=512)
    jax.block_until_ready((features, embeddings))

    # Sanity check against a plain-JAX f32 reference (bf16 matmul operands in
    # the kernel => loosened tolerance; accumulation stays f32).
    feat_ref = jnp.maximum(x @ w1 + b1, 0.0)
    emb_ref = feat_ref @ w2 + b2
    assert features.shape == (N, out_channels)
    assert embeddings.shape == (N, embedding_dim)
    assert jnp.allclose(features, feat_ref, atol=2e-2, rtol=2e-2), (
        float(jnp.max(jnp.abs(features - feat_ref))))
    assert jnp.allclose(embeddings, emb_ref, atol=2e-2, rtol=2e-2), (
        float(jnp.max(jnp.abs(embeddings - emb_ref))))

    print("KERNEL_OK")
</pallas_src>

<mosaic_0001>
module attributes {stable_mosaic.version = 11 : i64} {
  func.func @multitask_kernel(%arg0: i32, %arg1: memref<512x32xf32, #tpu.memory_space<vmem>>, %arg2: memref<32x64xbf16, #tpu.memory_space<vmem>>, %arg3: memref<1x64xf32, #tpu.memory_space<vmem>>, %arg4: memref<64x128xbf16, #tpu.memory_space<vmem>>, %arg5: memref<1x128xf32, #tpu.memory_space<vmem>>, %arg6: memref<512x64xf32, #tpu.memory_space<vmem>>, %arg7: memref<512x128xf32, #tpu.memory_space<vmem>>) attributes {dimension_semantics = [#tpu.dimension_semantics<parallel>], iteration_bounds = array<i64: 2>, scalar_prefetch = 0 : i64, scratch_operands = 0 : i64, tpu.core_type = #tpu.core_type<tc>, window_params = [{transform_indices = @transform_0, window_bounds = array<i64: 512, 32>}, {pipeline_mode = #tpu.pipeline_mode<synchronous>, transform_indices = @transform_1, window_bounds = array<i64: 32, 64>}, {pipeline_mode = #tpu.pipeline_mode<synchronous>, transform_indices = @transform_2, window_bounds = array<i64: 1, 64>}, {pipeline_mode = #tpu.pipeline_mode<synchronous>, transform_indices = @transform_3, window_bounds = array<i64: 64, 128>}, {pipeline_mode = #tpu.pipeline_mode<synchronous>, transform_indices = @transform_4, window_bounds = array<i64: 1, 128>}, {transform_indices = @transform_5, window_bounds = array<i64: 512, 64>}, {transform_indices = @transform_6, window_bounds = array<i64: 512, 128>}]} {
    %c0 = arith.constant 0 : index
    %c0_0 = arith.constant 0 : index
    %0 = vector.load %arg1[%c0, %c0_0] : memref<512x32xf32, #tpu.memory_space<vmem>>, vector<512x32xf32>
    %1 = arith.truncf %0 : vector<512x32xf32> to vector<512x32xbf16>
    %c0_1 = arith.constant 0 : index
    %c0_2 = arith.constant 0 : index
    %2 = vector.load %arg2[%c0_1, %c0_2] : memref<32x64xbf16, #tpu.memory_space<vmem>>, vector<32x64xbf16>
    %cst = arith.constant dense<0.000000e+00> : vector<512x64xf32>
    %3 = tpu.matmul %1, %2, %cst {dimension_numbers = #tpu.dot_dimension_numbers<[1], [0], [0], [1], [0, 0, 1, 1], [], []>} : vector<512x32xbf16>, vector<32x64xbf16>, vector<512x64xf32> -> vector<512x64xf32>
    %c0_3 = arith.constant 0 : index
    %c0_4 = arith.constant 0 : index
    %4 = vector.load %arg3[%c0_3, %c0_4] : memref<1x64xf32, #tpu.memory_space<vmem>>, vector<1x64xf32>
    %5 = vector.broadcast %4 : vector<1x64xf32> to vector<512x64xf32>
    %6 = arith.addf %3, %5 : vector<512x64xf32>
    %cst_5 = arith.constant 0.000000e+00 : f32
    %7 = vector.broadcast %cst_5 : f32 to vector<512x64xf32>
    %8 = arith.maximumf %6, %7 : vector<512x64xf32>
    %c0_6 = arith.constant 0 : index
    %c0_7 = arith.constant 0 : index
    %9 = vector.load %arg6[%c0_6, %c0_7] : memref<512x64xf32, #tpu.memory_space<vmem>>, vector<512x64xf32>
    tpu.vector_store %arg6[%c0_6, %c0_7], %8 {strides = array<i32>} : memref<512x64xf32, #tpu.memory_space<vmem>>, vector<512x64xf32>,
    %10 = arith.truncf %8 : vector<512x64xf32> to vector<512x64xbf16>
    %c0_8 = arith.constant 0 : index
    %c0_9 = arith.constant 0 : index
    %11 = vector.load %arg4[%c0_8, %c0_9] : memref<64x128xbf16, #tpu.memory_space<vmem>>, vector<64x128xbf16>
    %cst_10 = arith.constant dense<0.000000e+00> : vector<512x128xf32>
    %12 = tpu.matmul %10, %11, %cst_10 {dimension_numbers = #tpu.dot_dimension_numbers<[1], [0], [0], [1], [0, 0, 1, 1], [], []>} : vector<512x64xbf16>, vector<64x128xbf16>, vector<512x128xf32> -> vector<512x128xf32>
    %c0_11 = arith.constant 0 : index
    %c0_12 = arith.constant 0 : index
    %13 = vector.load %arg5[%c0_11, %c0_12] : memref<1x128xf32, #tpu.memory_space<vmem>>, vector<1x128xf32>
    %14 = vector.broadcast %13 : vector<1x128xf32> to vector<512x128xf32>
    %15 = arith.addf %12, %14 : vector<512x128xf32>
    %c0_13 = arith.constant 0 : index
    %c0_14 = arith.constant 0 : index
    %16 = vector.load %arg7[%c0_13, %c0_14] : memref<512x128xf32, #tpu.memory_space<vmem>>, vector<512x128xf32>
    tpu.vector_store %arg7[%c0_13, %c0_14], %15 {strides = array<i32>} : memref<512x128xf32, #tpu.memory_space<vmem>>, vector<512x128xf32>,
    return
  }
  func.func @transform_0(%arg0: i32) -> (i32, i32) {
    %c0_i32 = arith.constant 0 : i32
    %c0_i32_0 = arith.constant 0 : i32
    return %arg0, %c0_i32 : i32, i32
  }
  func.func @transform_1(%arg0: i32) -> (i32, i32) {
    %c0_i32 = arith.constant 0 : i32
    %c0_i32_0 = arith.constant 0 : i32
    %c0_i32_1 = arith.constant 0 : i32
    return %c0_i32, %c0_i32_0 : i32, i32
  }
  func.func @transform_2(%arg0: i32) -> (i32, i32) {
    %c0_i32 = arith.constant 0 : i32
    %c0_i32_0 = arith.constant 0 : i32
    %c0_i32_1 = arith.constant 0 : i32
    return %c0_i32, %c0_i32_0 : i32, i32
  }
  func.func @transform_3(%arg0: i32) -> (i32, i32) {
    %c0_i32 = arith.constant 0 : i32
    %c0_i32_0 = arith.constant 0 : i32
    %c0_i32_1 = arith.constant 0 : i32
    return %c0_i32, %c0_i32_0 : i32, i32
  }
  func.func @transform_4(%arg0: i32) -> (i32, i32) {
    %c0_i32 = arith.constant 0 : i32
    %c0_i32_0 = arith.constant 0 : i32
    %c0_i32_1 = arith.constant 0 : i32
    return %c0_i32, %c0_i32_0 : i32, i32
  }
  func.func @transform_5(%arg0: i32) -> (i32, i32) {
    %c0_i32 = arith.constant 0 : i32
    %c0_i32_0 = arith.constant 0 : i32
    return %arg0, %c0_i32 : i32, i32
  }
  func.func @transform_6(%arg0: i32) -> (i32, i32) {
    %c0_i32 = arith.constant 0 : i32
    %c0_i32_0 = arith.constant 0 : i32
    return %arg0, %c0_i32 : i32, i32
  }
}

</mosaic_0001>

<llo_original>
// kernel: multitask_forward.1
$region0: #{multitask_forward.1}
  #allocation0 [shape = 'u32[]', space=smem, size = 0x4, offset = 0x4, fixed_abs, tag = 'smem constant byte address 0x4 - core index']
  #allocation1 [shape = 'u32[144,128]{1,0:T(1,128)}', space=vmem, size = 0x12000, scoped, tag = 'internal scratch']
  %s0 = inlined_call_operand.vmem [shape: f32[1024,32], index: 0, kind: input, shape index: {}]
  %s1 = inlined_call_operand.vmem [shape: bf16[32,64], index: 1, kind: input, shape index: {}]
  %s2 = inlined_call_operand.vmem [shape: f32[1,64], index: 2, kind: input, shape index: {}]
  %s3 = inlined_call_operand.vmem [shape: bf16[64,128], index: 3, kind: input, shape index: {}]
  %s4 = inlined_call_operand.vmem [shape: f32[1,128], index: 4, kind: input, shape index: {}]
  %s5 = inlined_call_operand.vmem [shape: f32[1024,64], index: 5, kind: output, shape index: {0}]
  %s6 = inlined_call_operand.hbm [shape: f32[1024,128], index: 6, kind: output, shape index: {1}]
  %7 = xla_tuple %s5, %s6
  %s8 = sld [smem:[#allocation0]]
  $region61: #{multitask_forward.1} parent=0
    _
  %s10 = ssub.s32 1, %s8
  %s11 = scalar_select 0, %s10, %s8
  $region1: #{multitask_forward.1} parent=0
    #allocation2 [shape = 'u8[524288]{0}', space=vmem, size = 0x80000, scoped, tag = 'output window, operand 1']
    #allocation3 [shape = 's32[2]{0}', space=sflag, size = 0x8, scoped, tag = 'scoped memory for multitask_forward.1']
    %12 = vsyncpa [#allocation3], 0
    %s13 = scalar_lea.sflag [#allocation3], 1
    %14 = vsyncpa %s13, 0
    loop: start=0, step=1, limit=4
    $region2: #{multitask_forward.1} parent=1 // loop_pre_header
      _
    $region3: #{multitask_forward.1} parent=1 // loop_header
      %s16 = sphi 0, %s20
      %p17 = scmp.ge.s32.totalorder %s16, 4
      %s26 = sphi 0, %s28
      %s29 = sphi 0, %s26
      %s30 = sphi 0, %s29
      %s46 = sphi 0, %s30
      %s50 = sphi 0, %s50
      %s52 = sphi 0, %s50
      %s53 = sphi 0, %s52
      %s67 = sphi 0, %s53
      %s71 = sphi 0, %s71
      %s73 = sphi 0, %s71
      %s74 = sphi 0, %s73
      %s88 = sphi 0, %s74
      %s92 = sphi 0, %s92
      %s94 = sphi 0, %s92
      %s95 = sphi 0, %s94
      %s109 = sphi 0, %s95
      %s113 = sphi 0, %s113
      %s115 = sphi 0, %s113
      %s116 = sphi 0, %s115
      %s130 = sphi 0, %s116
      %s136 = sphi 0, %s138
      %s139 = sphi 0, %s136
      %s140 = sphi 0, %s139
      %s156 = sphi 0, %s140
      %s162 = sphi 0, %s164
      %s165 = sphi 0, %s162
      %s166 = sphi 0, %s165
      %s182 = sphi 0, %s166
    $region4: #{multitask_forward.1} parent=1 // loop_header_branch
      %19 = sbr.rel (%p17) target = $region8
    $region5: #{multitask_forward.1} parent=1 // loop_body
      %s21 = ssub.s32 %s16, 1
      %s22 = ssub.s32 %s16, 2
      %s23 = sadd.s32 %s16, 1
      %s24 = ssub.s32 %s16, %s23
      %p25 = scmp.eq.s32.totalorder %s24, 0
      %s27 = sadd.s32 %s26, 1
      %s28 = scalar_select %p25, %s26, %s27
      %p31 = pneg %p25
      %p32 = scmp.eq.s32.totalorder %s16, 1
      %p33 = por %p31, %p32
      %p34 = scmp.ne.s32.totalorder %s26, %s29
      %p35 = scmp.eq.s32.totalorder %s16, 0
      %p36 = por %p34, %p35
      %p37 = scmp.ne.s32.totalorder %s26, %s29
      %p38 = scmp.eq.s32.totalorder %s21, 1
      %p39 = por %p37, %p38
      %p40 = scmp.ne.s32.totalorder %s29, %s30
      %p41 = scmp.eq.s32.totalorder %s21, 0
      %p42 = por %p40, %p41
      %p43 = scmp.ne.s32.totalorder %s29, %s30
      %p44 = scmp.eq.s32.totalorder %s22, 1
      %p45 = por %p43, %p44
      %p47 = scmp.ne.s32.totalorder %s30, %s46
      %p48 = scmp.eq.s32.totalorder %s22, 0
      %p49 = por %p47, %p48
      %s51 = sadd.s32 %s50, 1
      %p54 = scmp.eq.s32.totalorder %s16, 1
      %p55 = scmp.ne.s32.totalorder %s50, %s52
      %p56 = scmp.eq.s32.totalorder %s16, 0
      %p57 = por %p55, %p56
      %p58 = scmp.ne.s32.totalorder %s50, %s52
      %p59 = scmp.eq.s32.totalorder %s21, 1
      %p60 = por %p58, %p59
      %p61 = scmp.ne.s32.totalorder %s52, %s53
      %p62 = scmp.eq.s32.totalorder %s21, 0
      %p63 = por %p61, %p62
      %p64 = scmp.ne.s32.totalorder %s52, %s53
      %p65 = scmp.eq.s32.totalorder %s22, 1
      %p66 = por %p64, %p65
      %p68 = scmp.ne.s32.totalorder %s53, %s67
      %p69 = scmp.eq.s32.totalorder %s22, 0
      %p70 = por %p68, %p69
      %s72 = sadd.s32 %s71, 1
      %p75 = scmp.eq.s32.totalorder %s16, 1
      %p76 = scmp.ne.s32.totalorder %s71, %s73
      %p77 = scmp.eq.s32.totalorder %s16, 0
      %p78 = por %p76, %p77
      %p79 = scmp.ne.s32.totalorder %s71, %s73
      %p80 = scmp.eq.s32.totalorder %s21, 1
      %p81 = por %p79, %p80
      %p82 = scmp.ne.s32.totalorder %s73, %s74
      %p83 = scmp.eq.s32.totalorder %s21, 0
      %p84 = por %p82, %p83
      %p85 = scmp.ne.s32.totalorder %s73, %s74
      %p86 = scmp.eq.s32.totalorder %s22, 1
      %p87 = por %p85, %p86
      %p89 = scmp.ne.s32.totalorder %s74, %s88
      %p90 = scmp.eq.s32.totalorder %s22, 0
      %p91 = por %p89, %p90
      %s93 = sadd.s32 %s92, 1
      %p96 = scmp.eq.s32.totalorder %s16, 1
      %p97 = scmp.ne.s32.totalorder %s92, %s94
      %p98 = scmp.eq.s32.totalorder %s16, 0
      %p99 = por %p97, %p98
      %p100 = scmp.ne.s32.totalorder %s92, %s94
      %p101 = scmp.eq.s32.totalorder %s21, 1
      %p102 = por %p100, %p101
      %p103 = scmp.ne.s32.totalorder %s94, %s95
      %p104 = scmp.eq.s32.totalorder %s21, 0
      %p105 = por %p103, %p104
      %p106 = scmp.ne.s32.totalorder %s94, %s95
      %p107 = scmp.eq.s32.totalorder %s22, 1
      %p108 = por %p106, %p107
      %p110 = scmp.ne.s32.totalorder %s95, %s109
      %p111 = scmp.eq.s32.totalorder %s22, 0
      %p112 = por %p110, %p111
      %s114 = sadd.s32 %s113, 1
      %p117 = scmp.eq.s32.totalorder %s16, 1
      %p118 = scmp.ne.s32.totalorder %s113, %s115
      %p119 = scmp.eq.s32.totalorder %s16, 0
      %p120 = por %p118, %p119
      %p121 = scmp.ne.s32.totalorder %s113, %s115
      %p122 = scmp.eq.s32.totalorder %s21, 1
      %p123 = por %p121, %p122
      %p124 = scmp.ne.s32.totalorder %s115, %s116
      %p125 = scmp.eq.s32.totalorder %s21, 0
      %p126 = por %p124, %p125
      %p127 = scmp.ne.s32.totalorder %s115, %s116
      %p128 = scmp.eq.s32.totalorder %s22, 1
      %p129 = por %p127, %p128
      %p131 = scmp.ne.s32.totalorder %s116, %s130
      %p132 = scmp.eq.s32.totalorder %s22, 0
      %p133 = por %p131, %p132
      %s134 = ssub.s32 %s16, %s23
      %p135 = scmp.eq.s32.totalorder %s134, 0
      %s137 = sadd.s32 %s136, 1
      %s138 = scalar_select %p135, %s136, %s137
      %p141 = pneg %p135
      %p142 = scmp.eq.s32.totalorder %s16, 1
      %p143 = por %p141, %p142
      %p144 = scmp.ne.s32.totalorder %s136, %s139
      %p145 = scmp.eq.s32.totalorder %s16, 0
      %p146 = por %p144, %p145
      %p147 = scmp.ne.s32.totalorder %s136, %s139
      %p148 = scmp.eq.s32.totalorder %s21, 1
      %p149 = por %p147, %p148
      %p150 = scmp.ne.s32.totalorder %s139, %s140
      %p151 = scmp.eq.s32.totalorder %s21, 0
      %p152 = por %p150, %p151
      %p153 = scmp.ne.s32.totalorder %s139, %s140
      %p154 = scmp.eq.s32.totalorder %s22, 1
      %p155 = por %p153, %p154
      %p157 = scmp.ne.s32.totalorder %s140, %s156
      %p158 = scmp.eq.s32.totalorder %s22, 0
      %p159 = por %p157, %p158
      %s160 = ssub.s32 %s16, %s23
      %p161 = scmp.eq.s32.totalorder %s160, 0
      %s163 = sadd.s32 %s162, 1
      %s164 = scalar_select %p161, %s162, %s163
      %p167 = pneg %p161
      %p168 = scmp.eq.s32.totalorder %s16, 1
      %p169 = por %p167, %p168
      %p170 = scmp.ne.s32.totalorder %s162, %s165
      %p171 = scmp.eq.s32.totalorder %s16, 0
      %p172 = por %p170, %p171
      %p173 = scmp.ne.s32.totalorder %s162, %s165
      %p174 = scmp.eq.s32.totalorder %s21, 1
      %p175 = por %p173, %p174
      %p176 = scmp.ne.s32.totalorder %s165, %s166
      %p177 = scmp.eq.s32.totalorder %s21, 0
      %p178 = por %p176, %p177
      %p179 = scmp.ne.s32.totalorder %s165, %s166
      %p180 = scmp.eq.s32.totalorder %s22, 1
      %p181 = por %p179, %p180
      %p183 = scmp.ne.s32.totalorder %s166, %s182
      %p184 = scmp.eq.s32.totalorder %s22, 0
      %p185 = por %p183, %p184
      %p186 = scmp.le.s32.totalorder 1, %s16
      %p187 = scmp.lt.s32.totalorder %s16, 3
      %p188 = pnand %p186, %p187
      %p189 = pneg %p188
      // Predicated region
      $region9: #{multitask_forward.1} parent=5 // pred_check
        _
      $region10: #{multitask_forward.1} parent=5 // pred_check_branch
        %191 = sbr.rel (%p188) target = $region12
      $region11: #{multitask_forward.1} parent=5 // pred_region
        %s192 = ssub.s32 %s16, 1
        // Predicated region
        $region13: #{multitask_forward.1} parent=11 // pred_check
          %p193 = pneg %p63
        $region14: #{multitask_forward.1} parent=11 // pred_check_branch
          %195 = sbr.rel (%p193) target = $region16
        $region15: #{multitask_forward.1} parent=11 // pred_region
          _
        $region16: #{multitask_forward.1} parent=11 // pred_fallthru
          _
        // Predicated region
        $region17: #{multitask_forward.1} parent=11 // pred_check
          %p196 = pneg %p84
        $region18: #{multitask_forward.1} parent=11 // pred_check_branch
          %198 = sbr.rel (%p196) target = $region20
        $region19: #{multitask_forward.1} parent=11 // pred_region
          _
        $region20: #{multitask_forward.1} parent=11 // pred_fallthru
          _
        // Predicated region
        $region21: #{multitask_forward.1} parent=11 // pred_check
          %p199 = pneg %p105
        $region22: #{multitask_forward.1} parent=11 // pred_check_branch
          %201 = sbr.rel (%p199) target = $region24
        $region23: #{multitask_forward.1} parent=11 // pred_region
          _
        $region24: #{multitask_forward.1} parent=11 // pred_fallthru
          _
        // Predicated region
        $region25: #{multitask_forward.1} parent=11 // pred_check
          %p202 = pneg %p126
        $region26: #{multitask_forward.1} parent=11 // pred_check_branch
          %204 = sbr.rel (%p202) target = $region28
        $region27: #{multitask_forward.1} parent=11 // pred_region
          _
        $region28: #{multitask_forward.1} parent=11 // pred_fallthru
          _
      $region12: #{multitask_forward.1} parent=5 // pred_fallthru
        _
      %p205 = scmp.lt.s32.totalorder %s16, 2
      // Predicated region
      $region29: #{multitask_forward.1} parent=5 // pred_check
        %p206 = pneg %p205
      $region30: #{multitask_forward.1} parent=5 // pred_check_branch
        %208 = sbr.rel (%p206) target = $region32
      $region31: #{multitask_forward.1} parent=5 // pred_region
        // Predicated region
        $region33: #{multitask_forward.1} parent=31 // pred_check
          %p209 = pneg %p36
        $region34: #{multitask_forward.1} parent=31 // pred_check_branch
          %211 = sbr.rel (%p209) target = $region36
        $region35: #{multitask_forward.1} parent=31 // pred_region
          %s212 = smul.u32 64, %s16
          %p213 = scmp.lt.s32.totalorder %s212, 127
          %s214 = scalar_select %p213, %s212, 127
          %s215 = smul.addr %s214, 8
          %s216 = scalar_lea.vmem %s0, %s215
          %s217 = smul.u32 64, %s16
        $region36: #{multitask_forward.1} parent=31 // pred_fallthru
          _
      $region32: #{multitask_forward.1} parent=5 // pred_fallthru
        _
      %p218 = scmp.le.s32.totalorder 1, %s16
      %p219 = scmp.lt.s32.totalorder %s16, 3
      %p220 = pnand %p218, %p219
      %p221 = pneg %p220
      // Predicated region
      $region37: #{multitask_forward.1} parent=5 // pred_check
        _
      $region38: #{multitask_forward.1} parent=5 // pred_check_branch
        %223 = sbr.rel (%p220) target = $region40
      $region39: #{multitask_forward.1} parent=5 // pred_region
        %s224 = ssub.s32 %s16, 1
        %s225 = smul.u32 64, %s21
        %p226 = scmp.lt.s32.totalorder %s225, 127
        %s227 = scalar_select %p226, %s225, 127
        %s228 = smul.addr %s227, 8
        %s229 = scalar_lea.vmem %s0, %s228
        %p230 = pneg %p42
        %p231 = pneg %p39
        %p232 = pneg %p63
        %p233 = pneg %p60
        %p234 = pneg %p84
        %p235 = pneg %p81
        %p236 = pneg %p105
        %p237 = pneg %p102
        %p238 = pneg %p126
        %p239 = pneg %p123
        %p240 = pneg %p152
        %p241 = pneg %p149
        %s242 = smul.u32 64, %s21
        %p243 = scmp.lt.s32.totalorder %s242, 127
        %s244 = scalar_select %p243, %s242, 127
        %s245 = smul.addr %s244, 8
        %s246 = scalar_lea.vmem %s5, %s245
        %p247 = pneg %p178
        %p248 = pneg %p175
        %s249 = sand.u32 %s165, 1
        %s250 = scalar_lea.sflag [#allocation3], %s249
        %s251 = sand.u32 %s165, 1
        %s252 = smul.addr %s251, 512
        %s253 = scalar_lea.vmem [#allocation2], %s252
        %s254 = smul.u32 64, %s21
        %p255 = scmp.lt.s32.totalorder %s254, 127
        %s256 = scalar_select %p255, %s254, 127
        %s257 = smul.addr %s256, 8
        %s258 = scalar_lea.vmem %s0, %s257
        %s259 = smul.u32 64, %s21
        %s260 = smul.u32 64, %s21
        %p261 = scmp.lt.s32.totalorder %s260, 127
        %s262 = scalar_select %p261, %s260, 127
        %s263 = smul.addr %s262, 8
        %s264 = scalar_lea.vmem %s5, %s263
        %s265 = smul.u32 64, %s21
        %s266 = smul.u32 64, %s21
        %v268 = vld [vmem:[%s258] sm:$0xff]
        %v269 = vld [vmem:[%s258 + $0x8] sm:$0xff]
        %v270 = vld [vmem:[%s258 + $0x10] sm:$0xff]
        %v271 = vld [vmem:[%s258 + $0x18] sm:$0xff]
        %v272 = vld [vmem:[%s258 + $0x20] sm:$0xff]
        %v273 = vld [vmem:[%s258 + $0x28] sm:$0xff]
        %v274 = vld [vmem:[%s258 + $0x30] sm:$0xff]
        %v275 = vld [vmem:[%s258 + $0x38] sm:$0xff]
        %v276 = vld [vmem:[%s258 + $0x40] sm:$0xff]
        %v277 = vld [vmem:[%s258 + $0x48] sm:$0xff]
        %v278 = vld [vmem:[%s258 + $0x50] sm:$0xff]
        %v279 = vld [vmem:[%s258 + $0x58] sm:$0xff]
        %v280 = vld [vmem:[%s258 + $0x60] sm:$0xff]
        %v281 = vld [vmem:[%s258 + $0x68] sm:$0xff]
        %v282 = vld [vmem:[%s258 + $0x70] sm:$0xff]
        %v283 = vld [vmem:[%s258 + $0x78] sm:$0xff]
        %v284 = vld [vmem:[%s258 + $0x80] sm:$0xff]
        %v285 = vld [vmem:[%s258 + $0x88] sm:$0xff]
        %v286 = vld [vmem:[%s258 + $0x90] sm:$0xff]
        %v287 = vld [vmem:[%s258 + $0x98] sm:$0xff]
        %v288 = vld [vmem:[%s258 + $0xa0] sm:$0xff]
        %v289 = vld [vmem:[%s258 + $0xa8] sm:$0xff]
        %v290 = vld [vmem:[%s258 + $0xb0] sm:$0xff]
        %v291 = vld [vmem:[%s258 + $0xb8] sm:$0xff]
        %v292 = vld [vmem:[%s258 + $0xc0] sm:$0xff]
        %v293 = vld [vmem:[%s258 + $0xc8] sm:$0xff]
        %v294 = vld [vmem:[%s258 + $0xd0] sm:$0xff]
        %v295 = vld [vmem:[%s258 + $0xd8] sm:$0xff]
        %v296 = vld [vmem:[%s258 + $0xe0] sm:$0xff]
        %v297 = vld [vmem:[%s258 + $0xe8] sm:$0xff]
        %v298 = vld [vmem:[%s258 + $0xf0] sm:$0xff]
        %v299 = vld [vmem:[%s258 + $0xf8] sm:$0xff]
        %v300 = vld [vmem:[%s258 + $0x100] sm:$0xff]
        %v301 = vld [vmem:[%s258 + $0x108] sm:$0xff]
        %v302 = vld [vmem:[%s258 + $0x110] sm:$0xff]
        %v303 = vld [vmem:[%s258 + $0x118] sm:$0xff]
        %v304 = vld [vmem:[%s258 + $0x120] sm:$0xff]
        %v305 = vld [vmem:[%s258 + $0x128] sm:$0xff]
        %v306 = vld [vmem:[%s258 + $0x130] sm:$0xff]
        %v307 = vld [vmem:[%s258 + $0x138] sm:$0xff]
        %v308 = vld [vmem:[%s258 + $0x140] sm:$0xff]
        %v309 = vld [vmem:[%s258 + $0x148] sm:$0xff]
        %v310 = vld [vmem:[%s258 + $0x150] sm:$0xff]
        %v311 = vld [vmem:[%s258 + $0x158] sm:$0xff]
        %v312 = vld [vmem:[%s258 + $0x160] sm:$0xff]
        %v313 = vld [vmem:[%s258 + $0x168] sm:$0xff]
        %v314 = vld [vmem:[%s258 + $0x170] sm:$0xff]
        %v315 = vld [vmem:[%s258 + $0x178] sm:$0xff]
        %v316 = vld [vmem:[%s258 + $0x180] sm:$0xff]
        %v317 = vld [vmem:[%s258 + $0x188] sm:$0xff]
        %v318 = vld [vmem:[%s258 + $0x190] sm:$0xff]
        %v319 = vld [vmem:[%s258 + $0x198] sm:$0xff]
        %v320 = vld [vmem:[%s258 + $0x1a0] sm:$0xff]
        %v321 = vld [vmem:[%s258 + $0x1a8] sm:$0xff]
        %v322 = vld [vmem:[%s258 + $0x1b0] sm:$0xff]
        %v323 = vld [vmem:[%s258 + $0x1b8] sm:$0xff]
        %v324 = vld [vmem:[%s258 + $0x1c0] sm:$0xff]
        %v325 = vld [vmem:[%s258 + $0x1c8] sm:$0xff]
        %v326 = vld [vmem:[%s258 + $0x1d0] sm:$0xff]
        %v327 = vld [vmem:[%s258 + $0x1d8] sm:$0xff]
        %v328 = vld [vmem:[%s258 + $0x1e0] sm:$0xff]
        %v329 = vld [vmem:[%s258 + $0x1e8] sm:$0xff]
        %v330 = vld [vmem:[%s258 + $0x1f0] sm:$0xff]
        %v331 = vld [vmem:[%s258 + $0x1f8] sm:$0xff]
        %v332 = vpack.c.bf16 %v269, %v268
        %v333 = vpack.c.bf16 %v271, %v270
        %v334 = vpack.c.bf16 %v273, %v272
        %v335 = vpack.c.bf16 %v275, %v274
        %v336 = vpack.c.bf16 %v277, %v276
        %v337 = vpack.c.bf16 %v279, %v278
        %v338 = vpack.c.bf16 %v281, %v280
        %v339 = vpack.c.bf16 %v283, %v282
        %v340 = vpack.c.bf16 %v285, %v284
        %v341 = vpack.c.bf16 %v287, %v286
        %v342 = vpack.c.bf16 %v289, %v288
        %v343 = vpack.c.bf16 %v291, %v290
        %v344 = vpack.c.bf16 %v293, %v292
        %v345 = vpack.c.bf16 %v295, %v294
        %v346 = vpack.c.bf16 %v297, %v296
        %v347 = vpack.c.bf16 %v299, %v298
        %v348 = vpack.c.bf16 %v301, %v300
        %v349 = vpack.c.bf16 %v303, %v302
        %v350 = vpack.c.bf16 %v305, %v304
        %v351 = vpack.c.bf16 %v307, %v306
        %v352 = vpack.c.bf16 %v309, %v308
        %v353 = vpack.c.bf16 %v311, %v310
        %v354 = vpack.c.bf16 %v313, %v312
        %v355 = vpack.c.bf16 %v315, %v314
        %v356 = vpack.c.bf16 %v317, %v316
        %v357 = vpack.c.bf16 %v319, %v318
        %v358 = vpack.c.bf16 %v321, %v320
        %v359 = vpack.c.bf16 %v323, %v322
        %v360 = vpack.c.bf16 %v325, %v324
        %v361 = vpack.c.bf16 %v327, %v326
        %v362 = vpack.c.bf16 %v329, %v328
        %v363 = vpack.c.bf16 %v331, %v330
        %v364 = vld [vmem:[%s1] sm:$0xf]
        %v365 = vld [vmem:[%s1 + $0x4] sm:$0xf]
        %v366 = vld [vmem:[%s1 + $0x8] sm:$0xf]
        %v367 = vld [vmem:[%s1 + $0xc] sm:$0xf]
        %v368 = vld [vmem:[%s2] sm:$0x1]
        %v370 = vlaneseq
        %v371 = vshrl.u32 %v370, 7
        %v372 = vsub.s32 0, %v371
        %v373 = vrot.slane %v368, %v372
        %v379 = vunpack.c.l.b16 %v364
        %v380 = vunpack.c.l.b16 %v365
        %v381 = vunpack.c.l.b16 %v366
        %v382 = vunpack.c.l.b16 %v367
        %v383 = vpack.c.b16 %v380, %v379
        %v384 = vpack.c.b16 %v382, %v381
        %vm387 = vcmask 261120
        %v389 = vsel %vm387, %v332, 0
        %v392 = vsel %vm387, %v333, 0
        %v395 = vsel %vm387, %v334, 0
        %v398 = vsel %vm387, %v335, 0
        %v401 = vsel %vm387, %v336, 0
        %v404 = vsel %vm387, %v337, 0
        %v407 = vsel %vm387, %v338, 0
        %v410 = vsel %vm387, %v339, 0
        %v413 = vsel %vm387, %v340, 0
        %v416 = vsel %vm387, %v341, 0
        %v419 = vsel %vm387, %v342, 0
        %v422 = vsel %vm387, %v343, 0
        %v425 = vsel %vm387, %v344, 0
        %v428 = vsel %vm387, %v345, 0
        %v431 = vsel %vm387, %v346, 0
        %v434 = vsel %vm387, %v347, 0
        %v437 = vsel %vm387, %v348, 0
        %v440 = vsel %vm387, %v349, 0
        %v443 = vsel %vm387, %v350, 0
        %v446 = vsel %vm387, %v351, 0
        %v449 = vsel %vm387, %v352, 0
        %v452 = vsel %vm387, %v353, 0
        %v455 = vsel %vm387, %v354, 0
        %v458 = vsel %vm387, %v355, 0
        %v461 = vsel %vm387, %v356, 0
        %v464 = vsel %vm387, %v357, 0
        %v467 = vsel %vm387, %v358, 0
        %v470 = vsel %vm387, %v359, 0
        %v473 = vsel %vm387, %v360, 0
        %v476 = vsel %vm387, %v361, 0
        %v479 = vsel %vm387, %v362, 0
        %v482 = vsel %vm387, %v363, 0
        %484 = vmatprep.subr.bf16.mxu0 0
        %485 = vmatpush1.bf16.msra.mxu0 %v383
        %486 = vmatprep.subr.bf16.mxu0 0
        %487 = vmatpush1.bf16.msra.mxu0 %v384
        %488 = vmatprep.subr.bf16.mxu0 0
        %489 = vmatpush1.bf16.msra.mxu0 0
        %490 = vmatprep.subr.bf16.mxu0 0
        %491 = vmatpush1.bf16.msra.mxu0 0
        %492 = vmatprep.subr.bf16.mxu0 0
        %493 = vmatpush1.bf16.msra.mxu0 0
        %494 = vmatprep.subr.bf16.mxu0 0
        %495 = vmatpush1.bf16.msra.mxu0 0
        %496 = vmatprep.subr.bf16.mxu0 0
        %497 = vmatpush1.bf16.msra.mxu0 0
        %498 = vmatprep.subr.bf16.mxu0 0
        %499 = vmatpush1.bf16.msra.mxu0 0
        %500 = vmatprep.subr.bf16.mxu0 0
        %501 = vmatpush1.bf16.msra.mxu0 0
        %502 = vmatprep.subr.bf16.mxu0 0
        %503 = vmatpush1.bf16.msra.mxu0 0
        %504 = vmatprep.subr.bf16.mxu0 0
        %505 = vmatpush1.bf16.msra.mxu0 0
        %506 = vmatprep.subr.bf16.mxu0 0
        %507 = vmatpush1.bf16.msra.mxu0 0
        %508 = vmatprep.subr.bf16.mxu0 0
        %509 = vmatpush1.bf16.msra.mxu0 0
        %510 = vmatprep.subr.bf16.mxu0 0
        %511 = vmatpush1.bf16.msra.mxu0 0
        %512 = vmatprep.subr.bf16.mxu0 0
        %513 = vmatpush1.bf16.msra.mxu0 0
        %514 = vmatprep.subr.bf16.mxu0 0
        %515 = vmatpush1.bf16.msra.mxu0 0
        %516 = vmatprep.mubr.bf16.mxu0 0
        %517 = vmatmul.mubr.bf16.gmra.mrb[0].mxu0 %v389
        %v518 = vpop.f32.mrb[0].mxu0
        %v519 = vadd.f32 %v373, %v518
        %v520 = vpop.f32.mrb[0].mxu0
        %v521 = vpop.f32.mrb[0].mxu0
        %v522 = vadd.f32 %v373, %v521
        %v523 = vpop.f32.mrb[0].mxu0
        %524 = vmatprep.mubr.bf16.mxu0 0
        %525 = vmatmul.mubr.bf16.gmra.mrb[0].mxu0 %v392
        %v526 = vpop.f32.mrb[0].mxu0
        %v527 = vadd.f32 %v373, %v526
        %v528 = vpop.f32.mrb[0].mxu0
        %v529 = vpop.f32.mrb[0].mxu0
        %v530 = vadd.f32 %v373, %v529
        %v531 = vpop.f32.mrb[0].mxu0
        %532 = vmatprep.mubr.bf16.mxu0 0
        %533 = vmatmul.mubr.bf16.gmra.mrb[0].mxu0 %v395
        %v534 = vpop.f32.mrb[0].mxu0
        %v535 = vadd.f32 %v373, %v534
        %v536 = vpop.f32.mrb[0].mxu0
        %v537 = vpop.f32.mrb[0].mxu0
        %v538 = vadd.f32 %v373, %v537
        %v539 = vpop.f32.mrb[0].mxu0
        %540 = vmatprep.mubr.bf16.mxu0 0
        %541 = vmatmul.mubr.bf16.gmra.mrb[0].mxu0 %v398
        %v542 = vpop.f32.mrb[0].mxu0
        %v543 = vadd.f32 %v373, %v542
        %v544 = vpop.f32.mrb[0].mxu0
        %v545 = vpop.f32.mrb[0].mxu0
        %v546 = vadd.f32 %v373, %v545
        %v547 = vpop.f32.mrb[0].mxu0
        %548 = vmatprep.mubr.bf16.mxu0 0
        %549 = vmatmul.mubr.bf16.gmra.mrb[0].mxu0 %v401
        %v550 = vpop.f32.mrb[0].mxu0
        %v551 = vadd.f32 %v373, %v550
        %v552 = vpop.f32.mrb[0].mxu0
        %v553 = vpop.f32.mrb[0].mxu0
        %v554 = vadd.f32 %v373, %v553
        %v555 = vpop.f32.mrb[0].mxu0
        %556 = vmatprep.mubr.bf16.mxu0 0
        %557 = vmatmul.mubr.bf16.gmra.mrb[0].mxu0 %v404
        %v558 = vpop.f32.mrb[0].mxu0
        %v559 = vadd.f32 %v373, %v558
        %v560 = vpop.f32.mrb[0].mxu0
        %v561 = vpop.f32.mrb[0].mxu0
        %v562 = vadd.f32 %v373, %v561
        %v563 = vpop.f32.mrb[0].mxu0
        %564 = vmatprep.mubr.bf16.mxu0 0
        %565 = vmatmul.mubr.bf16.gmra.mrb[0].mxu0 %v407
        %v566 = vpop.f32.mrb[0].mxu0
        %v567 = vadd.f32 %v373, %v566
        %v568 = vpop.f32.mrb[0].mxu0
        %v569 = vpop.f32.mrb[0].mxu0
        %v570 = vadd.f32 %v373, %v569
        %v571 = vpop.f32.mrb[0].mxu0
        %572 = vmatprep.mubr.bf16.mxu0 0
        %573 = vmatmul.mubr.bf16.gmra.mrb[0].mxu0 %v410
        %v574 = vpop.f32.mrb[0].mxu0
        %v575 = vadd.f32 %v373, %v574
        %v576 = vpop.f32.mrb[0].mxu0
        %v577 = vpop.f32.mrb[0].mxu0
        %v578 = vadd.f32 %v373, %v577
        %v579 = vpop.f32.mrb[0].mxu0
        %580 = vmatprep.mubr.bf16.mxu0 0
        %581 = vmatmul.mubr.bf16.gmra.mrb[0].mxu0 %v413
        %v582 = vpop.f32.mrb[0].mxu0
        %v583 = vadd.f32 %v373, %v582
        %v584 = vpop.f32.mrb[0].mxu0
        %v585 = vpop.f32.mrb[0].mxu0
        %v586 = vadd.f32 %v373, %v585
        %v587 = vpop.f32.mrb[0].mxu0
        %588 = vmatprep.mubr.bf16.mxu0 0
        %589 = vmatmul.mubr.bf16.gmra.mrb[0].mxu0 %v416
        %v590 = vpop.f32.mrb[0].mxu0
        %v591 = vadd.f32 %v373, %v590
        %v592 = vpop.f32.mrb[0].mxu0
        %v593 = vpop.f32.mrb[0].mxu0
        %v594 = vadd.f32 %v373, %v593
        %v595 = vpop.f32.mrb[0].mxu0
        %596 = vmatprep.mubr.bf16.mxu0 0
        %597 = vmatmul.mubr.bf16.gmra.mrb[0].mxu0 %v419
        %v598 = vpop.f32.mrb[0].mxu0
        %v599 = vadd.f32 %v373, %v598
        %v600 = vpop.f32.mrb[0].mxu0
        %v601 = vpop.f32.mrb[0].mxu0
        %v602 = vadd.f32 %v373, %v601
        %v603 = vpop.f32.mrb[0].mxu0
        %604 = vmatprep.mubr.bf16.mxu0 0
        %605 = vmatmul.mubr.bf16.gmra.mrb[0].mxu0 %v422
        %v606 = vpop.f32.mrb[0].mxu0
        %v607 = vadd.f32 %v373, %v606
        %v608 = vpop.f32.mrb[0].mxu0
        %v609 = vpop.f32.mrb[0].mxu0
        %v610 = vadd.f32 %v373, %v609
        %v611 = vpop.f32.mrb[0].mxu0
        %612 = vmatprep.mubr.bf16.mxu0 0
        %613 = vmatmul.mubr.bf16.gmra.mrb[0].mxu0 %v425
        %v614 = vpop.f32.mrb[0].mxu0
        %v615 = vadd.f32 %v373, %v614
        %v616 = vpop.f32.mrb[0].mxu0
        %v617 = vpop.f32.mrb[0].mxu0
        %v618 = vadd.f32 %v373, %v617
        %v619 = vpop.f32.mrb[0].mxu0
        %620 = vmatprep.mubr.bf16.mxu0 0
        %621 = vmatmul.mubr.bf16.gmra.mrb[0].mxu0 %v428
        %v622 = vpop.f32.mrb[0].mxu0
        %v623 = vadd.f32 %v373, %v622
        %v624 = vpop.f32.mrb[0].mxu0
        %v625 = vpop.f32.mrb[0].mxu0
        %v626 = vadd.f32 %v373, %v625
        %v627 = vpop.f32.mrb[0].mxu0
        %628 = vmatprep.mubr.bf16.mxu0 0
        %629 = vmatmul.mubr.bf16.gmra.mrb[0].mxu0 %v431
        %v630 = vpop.f32.mrb[0].mxu0
        %v631 = vadd.f32 %v373, %v630
        %v632 = vpop.f32.mrb[0].mxu0
        %v633 = vpop.f32.mrb[0].mxu0
        %v634 = vadd.f32 %v373, %v633
        %v635 = vpop.f32.mrb[0].mxu0
        %636 = vmatprep.mubr.bf16.mxu0 0
        %637 = vmatmul.mubr.bf16.gmra.mrb[0].mxu0 %v434
        %v638 = vpop.f32.mrb[0].mxu0
        %v639 = vadd.f32 %v373, %v638
        %v640 = vpop.f32.mrb[0].mxu0
        %v641 = vpop.f32.mrb[0].mxu0
        %v642 = vadd.f32 %v373, %v641
        %v643 = vpop.f32.mrb[0].mxu0
        %644 = vmatprep.mubr.bf16.mxu0 0
        %645 = vmatmul.mubr.bf16.gmra.mrb[0].mxu0 %v437
        %v646 = vpop.f32.mrb[0].mxu0
        %v647 = vadd.f32 %v373, %v646
        %v648 = vpop.f32.mrb[0].mxu0
        %v649 = vpop.f32.mrb[0].mxu0
        %v650 = vadd.f32 %v373, %v649
        %v651 = vpop.f32.mrb[0].mxu0
        %652 = vmatprep.mubr.bf16.mxu0 0
        %653 = vmatmul.mubr.bf16.gmra.mrb[0].mxu0 %v440
        %v654 = vpop.f32.mrb[0].mxu0
        %v655 = vadd.f32 %v373, %v654
        %v656 = vpop.f32.mrb[0].mxu0
        %v657 = vpop.f32.mrb[0].mxu0
        %v658 = vadd.f32 %v373, %v657
        %v659 = vpop.f32.mrb[0].mxu0
        %660 = vmatprep.mubr.bf16.mxu0 0
        %661 = vmatmul.mubr.bf16.gmra.mrb[0].mxu0 %v443
        %v662 = vpop.f32.mrb[0].mxu0
        %v663 = vadd.f32 %v373, %v662
        %v664 = vpop.f32.mrb[0].mxu0
        %v665 = vpop.f32.mrb[0].mxu0
        %v666 = vadd.f32 %v373, %v665
        %v667 = vpop.f32.mrb[0].mxu0
        %668 = vmatprep.mubr.bf16.mxu0 0
        %669 = vmatmul.mubr.bf16.gmra.mrb[0].mxu0 %v446
        %v670 = vpop.f32.mrb[0].mxu0
        %v671 = vadd.f32 %v373, %v670
        %v672 = vpop.f32.mrb[0].mxu0
        %v673 = vpop.f32.mrb[0].mxu0
        %v674 = vadd.f32 %v373, %v673
        %v675 = vpop.f32.mrb[0].mxu0
        %676 = vmatprep.mubr.bf16.mxu0 0
        %677 = vmatmul.mubr.bf16.gmra.mrb[0].mxu0 %v449
        %v678 = vpop.f32.mrb[0].mxu0
        %v679 = vadd.f32 %v373, %v678
        %v680 = vpop.f32.mrb[0].mxu0
        %v681 = vpop.f32.mrb[0].mxu0
        %v682 = vadd.f32 %v373, %v681
        %v683 = vpop.f32.mrb[0].mxu0
        %684 = vmatprep.mubr.bf16.mxu0 0
        %685 = vmatmul.mubr.bf16.gmra.mrb[0].mxu0 %v452
        %v686 = vpop.f32.mrb[0].mxu0
        %v687 = vadd.f32 %v373, %v686
        %v688 = vpop.f32.mrb[0].mxu0
        %v689 = vpop.f32.mrb[0].mxu0
        %v690 = vadd.f32 %v373, %v689
        %v691 = vpop.f32.mrb[0].mxu0
        %692 = vmatprep.mubr.bf16.mxu0 0
        %693 = vmatmul.mubr.bf16.gmra.mrb[0].mxu0 %v455
        %v694 = vpop.f32.mrb[0].mxu0
        %v695 = vadd.f32 %v373, %v694
        %v696 = vpop.f32.mrb[0].mxu0
        %v697 = vpop.f32.mrb[0].mxu0
        %v698 = vadd.f32 %v373, %v697
        %v699 = vpop.f32.mrb[0].mxu0
        %700 = vmatprep.mubr.bf16.mxu0 0
        %701 = vmatmul.mubr.bf16.gmra.mrb[0].mxu0 %v458
        %v702 = vpop.f32.mrb[0].mxu0
        %v703 = vadd.f32 %v373, %v702
        %v704 = vpop.f32.mrb[0].mxu0
        %v705 = vpop.f32.mrb[0].mxu0
        %v706 = vadd.f32 %v373, %v705
        %v707 = vpop.f32.mrb[0].mxu0
        %708 = vmatprep.mubr.bf16.mxu0 0
        %709 = vmatmul.mubr.bf16.gmra.mrb[0].mxu0 %v461
        %v710 = vpop.f32.mrb[0].mxu0
        %v711 = vadd.f32 %v373, %v710
        %v712 = vpop.f32.mrb[0].mxu0
        %v713 = vpop.f32.mrb[0].mxu0
        %v714 = vadd.f32 %v373, %v713
        %v715 = vpop.f32.mrb[0].mxu0
        %716 = vmatprep.mubr.bf16.mxu0 0
        %717 = vmatmul.mubr.bf16.gmra.mrb[0].mxu0 %v464
        %v718 = vpop.f32.mrb[0].mxu0
        %v719 = vadd.f32 %v373, %v718
        %v720 = vpop.f32.mrb[0].mxu0
        %v721 = vpop.f32.mrb[0].mxu0
        %v722 = vadd.f32 %v373, %v721
        %v723 = vpop.f32.mrb[0].mxu0
        %724 = vmatprep.mubr.bf16.mxu0 0
        %725 = vmatmul.mubr.bf16.gmra.mrb[0].mxu0 %v467
        %v726 = vpop.f32.mrb[0].mxu0
        %v727 = vadd.f32 %v373, %v726
        %v728 = vpop.f32.mrb[0].mxu0
        %v729 = vpop.f32.mrb[0].mxu0
        %v730 = vadd.f32 %v373, %v729
        %v731 = vpop.f32.mrb[0].mxu0
        %732 = vmatprep.mubr.bf16.mxu0 0
        %733 = vmatmul.mubr.bf16.gmra.mrb[0].mxu0 %v470
        %v734 = vpop.f32.mrb[0].mxu0
        %v735 = vadd.f32 %v373, %v734
        %v736 = vpop.f32.mrb[0].mxu0
        %v737 = vpop.f32.mrb[0].mxu0
        %v738 = vadd.f32 %v373, %v737
        %v739 = vpop.f32.mrb[0].mxu0
        %740 = vmatprep.mubr.bf16.mxu0 0
        %741 = vmatmul.mubr.bf16.gmra.mrb[0].mxu0 %v473
        %v742 = vpop.f32.mrb[0].mxu0
        %v743 = vadd.f32 %v373, %v742
        %v744 = vpop.f32.mrb[0].mxu0
        %v745 = vpop.f32.mrb[0].mxu0
        %v746 = vadd.f32 %v373, %v745
        %v747 = vpop.f32.mrb[0].mxu0
        %748 = vmatprep.mubr.bf16.mxu0 0
        %749 = vmatmul.mubr.bf16.gmra.mrb[0].mxu0 %v476
        %v750 = vpop.f32.mrb[0].mxu0
        %v751 = vadd.f32 %v373, %v750
        %v752 = vpop.f32.mrb[0].mxu0
        %v753 = vpop.f32.mrb[0].mxu0
        %v754 = vadd.f32 %v373, %v753
        %v755 = vpop.f32.mrb[0].mxu0
        %756 = vmatprep.mubr.bf16.mxu0 0
        %757 = vmatmul.mubr.bf16.gmra.mrb[0].mxu0 %v479
        %v758 = vpop.f32.mrb[0].mxu0
        %v759 = vadd.f32 %v373, %v758
        %v760 = vpop.f32.mrb[0].mxu0
        %v761 = vpop.f32.mrb[0].mxu0
        %v762 = vadd.f32 %v373, %v761
        %v763 = vpop.f32.mrb[0].mxu0
        %764 = vmatprep.mubr.bf16.mxu0 0
        %765 = vmatmul.mubr.bf16.gmra.mrb[0].mxu0 %v482
        %v766 = vpop.f32.mrb[0].mxu0
        %v767 = vadd.f32 %v373, %v766
        %v768 = vpop.f32.mrb[0].mxu0
        %v769 = vpop.f32.mrb[0].mxu0
        %v770 = vadd.f32 %v373, %v769
        %v771 = vpop.f32.mrb[0].mxu0
        %772 = vdwg.mxu0
        %v773 = vmax.f32 %v519, 0.0
        %v774 = vmax.f32 %v522, 0.0
        %v775 = vmax.f32 %v527, 0.0
        %v776 = vmax.f32 %v530, 0.0
        %v777 = vmax.f32 %v535, 0.0
        %v778 = vmax.f32 %v538, 0.0
        %v779 = vmax.f32 %v543, 0.0
        %v780 = vmax.f32 %v546, 0.0
        %v781 = vmax.f32 %v551, 0.0
        %v782 = vmax.f32 %v554, 0.0
        %v783 = vmax.f32 %v559, 0.0
        %v784 = vmax.f32 %v562, 0.0
        %v785 = vmax.f32 %v567, 0.0
        %v786 = vmax.f32 %v570, 0.0
        %v787 = vmax.f32 %v575, 0.0
        %v788 = vmax.f32 %v578, 0.0
        %v789 = vmax.f32 %v583, 0.0
        %v790 = vmax.f32 %v586, 0.0
        %v791 = vmax.f32 %v591, 0.0
        %v792 = vmax.f32 %v594, 0.0
        %v793 = vmax.f32 %v599, 0.0
        %v794 = vmax.f32 %v602, 0.0
        %v795 = vmax.f32 %v607, 0.0
        %v796 = vmax.f32 %v610, 0.0
        %v797 = vmax.f32 %v615, 0.0
        %v798 = vmax.f32 %v618, 0.0
        %v799 = vmax.f32 %v623, 0.0
        %v800 = vmax.f32 %v626, 0.0
        %v801 = vmax.f32 %v631, 0.0
        %v802 = vmax.f32 %v634, 0.0
        %v803 = vmax.f32 %v639, 0.0
        %v804 = vmax.f32 %v642, 0.0
        %v805 = vmax.f32 %v647, 0.0
        %v806 = vmax.f32 %v650, 0.0
        %v807 = vmax.f32 %v655, 0.0
        %v808 = vmax.f32 %v658, 0.0
        %v809 = vmax.f32 %v663, 0.0
        %v810 = vmax.f32 %v666, 0.0
        %v811 = vmax.f32 %v671, 0.0
        %v812 = vmax.f32 %v674, 0.0
        %v813 = vmax.f32 %v679, 0.0
        %v814 = vmax.f32 %v682, 0.0
        %v815 = vmax.f32 %v687, 0.0
        %v816 = vmax.f32 %v690, 0.0
        %v817 = vmax.f32 %v695, 0.0
        %v818 = vmax.f32 %v698, 0.0
        %v819 = vmax.f32 %v703, 0.0
        %v820 = vmax.f32 %v706, 0.0
        %v821 = vmax.f32 %v711, 0.0
        %v822 = vmax.f32 %v714, 0.0
        %v823 = vmax.f32 %v719, 0.0
        %v824 = vmax.f32 %v722, 0.0
        %v825 = vmax.f32 %v727, 0.0
        %v826 = vmax.f32 %v730, 0.0
        %v827 = vmax.f32 %v735, 0.0
        %v828 = vmax.f32 %v738, 0.0
        %v829 = vmax.f32 %v743, 0.0
        %v830 = vmax.f32 %v746, 0.0
        %v831 = vmax.f32 %v751, 0.0
        %v832 = vmax.f32 %v754, 0.0
        %v833 = vmax.f32 %v759, 0.0
        %v834 = vmax.f32 %v762, 0.0
        %v835 = vmax.f32 %v767, 0.0
        %v836 = vmax.f32 %v770, 0.0
        %vm837 = vcmask 523264
        %838 = vst.msk [vmem:[%s264] sm:$0xff] %vm837, %v773
        %839 = vst.msk [vmem:[%s264 + $0x8] sm:$0xff] %vm837, %v774
        %840 = vst.msk [vmem:[%s264 + $0x10] sm:$0xff] %vm837, %v775
        %841 = vst.msk [vmem:[%s264 + $0x18] sm:$0xff] %vm837, %v776
        %842 = vst.msk [vmem:[%s264 + $0x20] sm:$0xff] %vm837, %v777
        %843 = vst.msk [vmem:[%s264 + $0x28] sm:$0xff] %vm837, %v778
        %844 = vst.msk [vmem:[%s264 + $0x30] sm:$0xff] %vm837, %v779
        %845 = vst.msk [vmem:[%s264 + $0x38] sm:$0xff] %vm837, %v780
        %846 = vst.msk [vmem:[%s264 + $0x40] sm:$0xff] %vm837, %v781
        %847 = vst.msk [vmem:[%s264 + $0x48] sm:$0xff] %vm837, %v782
        %848 = vst.msk [vmem:[%s264 + $0x50] sm:$0xff] %vm837, %v783
        %849 = vst.msk [vmem:[%s264 + $0x58] sm:$0xff] %vm837, %v784
        %850 = vst.msk [vmem:[%s264 + $0x60] sm:$0xff] %vm837, %v785
        %851 = vst.msk [vmem:[%s264 + $0x68] sm:$0xff] %vm837, %v786
        %852 = vst.msk [vmem:[%s264 + $0x70] sm:$0xff] %vm837, %v787
        %853 = vst.msk [vmem:[%s264 + $0x78] sm:$0xff] %vm837, %v788
        %854 = vst.msk [vmem:[%s264 + $0x80] sm:$0xff] %vm837, %v789
        %855 = vst.msk [vmem:[%s264 + $0x88] sm:$0xff] %vm837, %v790
        %856 = vst.msk [vmem:[%s264 + $0x90] sm:$0xff] %vm837, %v791
        %857 = vst.msk [vmem:[%s264 + $0x98] sm:$0xff] %vm837, %v792
        %858 = vst.msk [vmem:[%s264 + $0xa0] sm:$0xff] %vm837, %v793
        %859 = vst.msk [vmem:[%s264 + $0xa8] sm:$0xff] %vm837, %v794
        %860 = vst.msk [vmem:[%s264 + $0xb0] sm:$0xff] %vm837, %v795
        %861 = vst.msk [vmem:[%s264 + $0xb8] sm:$0xff] %vm837, %v796
        %862 = vst.msk [vmem:[%s264 + $0xc0] sm:$0xff] %vm837, %v797
        %863 = vst.msk [vmem:[%s264 + $0xc8] sm:$0xff] %vm837, %v798
        %864 = vst.msk [vmem:[%s264 + $0xd0] sm:$0xff] %vm837, %v799
        %865 = vst.msk [vmem:[%s264 + $0xd8] sm:$0xff] %vm837, %v800
        %866 = vst.msk [vmem:[%s264 + $0xe0] sm:$0xff] %vm837, %v801
        %867 = vst.msk [vmem:[%s264 + $0xe8] sm:$0xff] %vm837, %v802
        %868 = vst.msk [vmem:[%s264 + $0xf0] sm:$0xff] %vm837, %v803
        %869 = vst.msk [vmem:[%s264 + $0xf8] sm:$0xff] %vm837, %v804
        %870 = vst.msk [vmem:[%s264 + $0x100] sm:$0xff] %vm837, %v805
        %871 = vst.msk [vmem:[%s264 + $0x108] sm:$0xff] %vm837, %v806
        %872 = vst.msk [vmem:[%s264 + $0x110] sm:$0xff] %vm837, %v807
        %873 = vst.msk [vmem:[%s264 + $0x118] sm:$0xff] %vm837, %v808
        %874 = vst.msk [vmem:[%s264 + $0x120] sm:$0xff] %vm837, %v809
        %875 = vst.msk [vmem:[%s264 + $0x128] sm:$0xff] %vm837, %v810
        %876 = vst.msk [vmem:[%s264 + $0x130] sm:$0xff] %vm837, %v811
        %877 = vst.msk [vmem:[%s264 + $0x138] sm:$0xff] %vm837, %v812
        %878 = vst.msk [vmem:[%s264 + $0x140] sm:$0xff] %vm837, %v813
        %879 = vst.msk [vmem:[%s264 + $0x148] sm:$0xff] %vm837, %v814
        %880 = vst.msk [vmem:[%s264 + $0x150] sm:$0xff] %vm837, %v815
        %881 = vst.msk [vmem:[%s264 + $0x158] sm:$0xff] %vm837, %v816
        %882 = vst.msk [vmem:[%s264 + $0x160] sm:$0xff] %vm837, %v817
        %883 = vst.msk [vmem:[%s264 + $0x168] sm:$0xff] %vm837, %v818
        %884 = vst.msk [vmem:[%s264 + $0x170] sm:$0xff] %vm837, %v819
        %885 = vst.msk [vmem:[%s264 + $0x178] sm:$0xff] %vm837, %v820
        %886 = vst.msk [vmem:[%s264 + $0x180] sm:$0xff] %vm837, %v821
        %887 = vst.msk [vmem:[%s264 + $0x188] sm:$0xff] %vm837, %v822
        %888 = vst.msk [vmem:[%s264 + $0x190] sm:$0xff] %vm837, %v823
        %889 = vst.msk [vmem:[%s264 + $0x198] sm:$0xff] %vm837, %v824
        %890 = vst.msk [vmem:[%s264 + $0x1a0] sm:$0xff] %vm837, %v825
        %891 = vst.msk [vmem:[%s264 + $0x1a8] sm:$0xff] %vm837, %v826
        %892 = vst.msk [vmem:[%s264 + $0x1b0] sm:$0xff] %vm837, %v827
        %893 = vst.msk [vmem:[%s264 + $0x1b8] sm:$0xff] %vm837, %v828
        %894 = vst.msk [vmem:[%s264 + $0x1c0] sm:$0xff] %vm837, %v829
        %895 = vst.msk [vmem:[%s264 + $0x1c8] sm:$0xff] %vm837, %v830
        %896 = vst.msk [vmem:[%s264 + $0x1d0] sm:$0xff] %vm837, %v831
        %897 = vst.msk [vmem:[%s264 + $0x1d8] sm:$0xff] %vm837, %v832
        %898 = vst.msk [vmem:[%s264 + $0x1e0] sm:$0xff] %vm837, %v833
        %899 = vst.msk [vmem:[%s264 + $0x1e8] sm:$0xff] %vm837, %v834
        %900 = vst.msk [vmem:[%s264 + $0x1f0] sm:$0xff] %vm837, %v835
        %901 = vst.msk [vmem:[%s264 + $0x1f8] sm:$0xff] %vm837, %v836
        %v902 = vpack.c.bf16 %v774, %v773
        %v903 = vpack.c.bf16 %v776, %v775
        %v904 = vpack.c.bf16 %v778, %v777
        %v905 = vpack.c.bf16 %v780, %v779
        %v906 = vpack.c.bf16 %v782, %v781
        %v907 = vpack.c.bf16 %v784, %v783
        %v908 = vpack.c.bf16 %v786, %v785
        %v909 = vpack.c.bf16 %v788, %v787
        %v910 = vpack.c.bf16 %v790, %v789
        %v911 = vpack.c.bf16 %v792, %v791
        %v912 = vpack.c.bf16 %v794, %v793
        %v913 = vpack.c.bf16 %v796, %v795
        %v914 = vpack.c.bf16 %v798, %v797
        %v915 = vpack.c.bf16 %v800, %v799
        %v916 = vpack.c.bf16 %v802, %v801
        %v917 = vpack.c.bf16 %v804, %v803
        %v918 = vpack.c.bf16 %v806, %v805
        %v919 = vpack.c.bf16 %v808, %v807
        %v920 = vpack.c.bf16 %v810, %v809
        %v921 = vpack.c.bf16 %v812, %v811
        %v922 = vpack.c.bf16 %v814, %v813
        %v923 = vpack.c.bf16 %v816, %v815
        %v924 = vpack.c.bf16 %v818, %v817
        %v925 = vpack.c.bf16 %v820, %v819
        %v926 = vpack.c.bf16 %v822, %v821
        %v927 = vpack.c.bf16 %v824, %v823
        %v928 = vpack.c.bf16 %v826, %v825
        %v929 = vpack.c.bf16 %v828, %v827
        %v930 = vpack.c.bf16 %v830, %v829
        %v931 = vpack.c.bf16 %v832, %v831
        %v932 = vpack.c.bf16 %v834, %v833
        %v933 = vpack.c.bf16 %v836, %v835
        %v934 = vld [vmem:[%s3] sm:$0xf]
        %v935 = vld [vmem:[%s3 + $0x4] sm:$0xf]
        %v936 = vld [vmem:[%s3 + $0x8] sm:$0xf]
        %v937 = vld [vmem:[%s3 + $0xc] sm:$0xf]
        %v938 = vld [vmem:[%s3 + $0x10] sm:$0xf]
        %v939 = vld [vmem:[%s3 + $0x14] sm:$0xf]
        %v940 = vld [vmem:[%s3 + $0x18] sm:$0xf]
        %v941 = vld [vmem:[%s3 + $0x1c] sm:$0xf]
        %v942 = vld [vmem:[%s4] sm:$0x1]
        %v944 = vlaneseq
        %v945 = vshrl.u32 %v944, 7
        %v946 = vsub.s32 0, %v945
        %v947 = vrot.slane %v942, %v946
        %v957 = vunpack.c.l.b16 %v934
        %v958 = vunpack.c.l.b16 %v935
        %v959 = vunpack.c.l.b16 %v936
        %v960 = vunpack.c.l.b16 %v937
        %v961 = vunpack.c.l.b16 %v938
        %v962 = vunpack.c.l.b16 %v939
        %v963 = vunpack.c.l.b16 %v940
        %v964 = vunpack.c.l.b16 %v941
        %v965 = vpack.c.b16 %v958, %v957
        %v966 = vpack.c.b16 %v960, %v959
        %v967 = vpack.c.b16 %v962, %v961
        %v968 = vpack.c.b16 %v964, %v963
        %v974 = vsel %vm837, %v902, 0
        %v977 = vsel %vm837, %v903, 0
        %v980 = vsel %vm837, %v904, 0
        %v983 = vsel %vm837, %v905, 0
        %v986 = vsel %vm837, %v906, 0
        %v989 = vsel %vm837, %v907, 0
        %v992 = vsel %vm837, %v908, 0
        %v995 = vsel %vm837, %v909, 0
        %v998 = vsel %vm837, %v910, 0
        %v1001 = vsel %vm837, %v911, 0
        %v1004 = vsel %vm837, %v912, 0
        %v1007 = vsel %vm837, %v913, 0
        %v1010 = vsel %vm837, %v914, 0
        %v1013 = vsel %vm837, %v915, 0
        %v1016 = vsel %vm837, %v916, 0
        %v1019 = vsel %vm837, %v917, 0
        %v1022 = vsel %vm837, %v918, 0
        %v1025 = vsel %vm837, %v919, 0
        %v1028 = vsel %vm837, %v920, 0
        %v1031 = vsel %vm837, %v921, 0
        %v1034 = vsel %vm837, %v922, 0
        %v1037 = vsel %vm837, %v923, 0
        %v1040 = vsel %vm837, %v924, 0
        %v1043 = vsel %vm837, %v925, 0
        %v1046 = vsel %vm837, %v926, 0
        %v1049 = vsel %vm837, %v927, 0
        %v1052 = vsel %vm837, %v928, 0
        %v1055 = vsel %vm837, %v929, 0
        %v1058 = vsel %vm837, %v930, 0
        %v1061 = vsel %vm837, %v931, 0
        %v1064 = vsel %vm837, %v932, 0
        %v1067 = vsel %vm837, %v933, 0
        %1069 = vmatprep.subr.bf16.mxu0 0
        %1070 = vmatpush1.bf16.msra.mxu0 %v965
        %1071 = vmatprep.subr.bf16.mxu0 0
        %1072 = vmatpush1.bf16.msra.mxu0 %v966
        %1073 = vmatprep.subr.bf16.mxu0 0
        %1074 = vmatpush1.bf16.msra.mxu0 %v967
        %1075 = vmatprep.subr.bf16.mxu0 0
        %1076 = vmatpush1.bf16.msra.mxu0 %v968
        %1077 = vmatprep.subr.bf16.mxu0 0
        %1078 = vmatpush1.bf16.msra.mxu0 0
        %1079 = vmatprep.subr.bf16.mxu0 0
        %1080 = vmatpush1.bf16.msra.mxu0 0
        %1081 = vmatprep.subr.bf16.mxu0 0
        %1082 = vmatpush1.bf16.msra.mxu0 0
        %1083 = vmatprep.subr.bf16.mxu0 0
        %1084 = vmatpush1.bf16.msra.mxu0 0
        %1085 = vmatprep.subr.bf16.mxu0 0
        %1086 = vmatpush1.bf16.msra.mxu0 0
        %1087 = vmatprep.subr.bf16.mxu0 0
        %1088 = vmatpush1.bf16.msra.mxu0 0
        %1089 = vmatprep.subr.bf16.mxu0 0
        %1090 = vmatpush1.bf16.msra.mxu0 0
        %1091 = vmatprep.subr.bf16.mxu0 0
        %1092 = vmatpush1.bf16.msra.mxu0 0
        %1093 = vmatprep.subr.bf16.mxu0 0
        %1094 = vmatpush1.bf16.msra.mxu0 0
        %1095 = vmatprep.subr.bf16.mxu0 0
        %1096 = vmatpush1.bf16.msra.mxu0 0
        %1097 = vmatprep.subr.bf16.mxu0 0
        %1098 = vmatpush1.bf16.msra.mxu0 0
        %1099 = vmatprep.subr.bf16.mxu0 0
        %1100 = vmatpush1.bf16.msra.mxu0 0
        %1101 = vmatprep.mubr.bf16.mxu0 0
        %1102 = vmatmul.mubr.bf16.gmra.mrb[0].mxu0 %v974
        %v1103 = vpop.f32.mrb[0].mxu0
        %v1104 = vadd.f32 %v947, %v1103
        %v1105 = vpop.f32.mrb[0].mxu0
        %v1106 = vpop.f32.mrb[0].mxu0
        %v1107 = vadd.f32 %v947, %v1106
        %v1108 = vpop.f32.mrb[0].mxu0
        %1109 = vmatprep.mubr.bf16.mxu0 0
        %1110 = vmatmul.mubr.bf16.gmra.mrb[0].mxu0 %v977
        %v1111 = vpop.f32.mrb[0].mxu0
        %v1112 = vadd.f32 %v947, %v1111
        %v1113 = vpop.f32.mrb[0].mxu0
        %v1114 = vpop.f32.mrb[0].mxu0
        %v1115 = vadd.f32 %v947, %v1114
        %v1116 = vpop.f32.mrb[0].mxu0
        %1117 = vmatprep.mubr.bf16.mxu0 0
        %1118 = vmatmul.mubr.bf16.gmra.mrb[0].mxu0 %v980
        %v1119 = vpop.f32.mrb[0].mxu0
        %v1120 = vadd.f32 %v947, %v1119
        %v1121 = vpop.f32.mrb[0].mxu0
        %v1122 = vpop.f32.mrb[0].mxu0
        %v1123 = vadd.f32 %v947, %v1122
        %v1124 = vpop.f32.mrb[0].mxu0
        %1125 = vmatprep.mubr.bf16.mxu0 0
        %1126 = vmatmul.mubr.bf16.gmra.mrb[0].mxu0 %v983
        %v1127 = vpop.f32.mrb[0].mxu0
        %v1128 = vadd.f32 %v947, %v1127
        %v1129 = vpop.f32.mrb[0].mxu0
        %v1130 = vpop.f32.mrb[0].mxu0
        %v1131 = vadd.f32 %v947, %v1130
        %v1132 = vpop.f32.mrb[0].mxu0
        %1133 = vmatprep.mubr.bf16.mxu0 0
        %1134 = vmatmul.mubr.bf16.gmra.mrb[0].mxu0 %v986
        %v1135 = vpop.f32.mrb[0].mxu0
        %v1136 = vadd.f32 %v947, %v1135
        %v1137 = vpop.f32.mrb[0].mxu0
        %v1138 = vpop.f32.mrb[0].mxu0
        %v1139 = vadd.f32 %v947, %v1138
        %v1140 = vpop.f32.mrb[0].mxu0
        %1141 = vmatprep.mubr.bf16.mxu0 0
        %1142 = vmatmul.mubr.bf16.gmra.mrb[0].mxu0 %v989
        %v1143 = vpop.f32.mrb[0].mxu0
        %v1144 = vadd.f32 %v947, %v1143
        %v1145 = vpop.f32.mrb[0].mxu0
        %v1146 = vpop.f32.mrb[0].mxu0
        %v1147 = vadd.f32 %v947, %v1146
        %v1148 = vpop.f32.mrb[0].mxu0
        %1149 = vmatprep.mubr.bf16.mxu0 0
        %1150 = vmatmul.mubr.bf16.gmra.mrb[0].mxu0 %v992
        %v1151 = vpop.f32.mrb[0].mxu0
        %v1152 = vadd.f32 %v947, %v1151
        %v1153 = vpop.f32.mrb[0].mxu0
        %v1154 = vpop.f32.mrb[0].mxu0
        %v1155 = vadd.f32 %v947, %v1154
        %v1156 = vpop.f32.mrb[0].mxu0
        %1157 = vmatprep.mubr.bf16.mxu0 0
        %1158 = vmatmul.mubr.bf16.gmra.mrb[0].mxu0 %v995
        %v1159 = vpop.f32.mrb[0].mxu0
        %v1160 = vadd.f32 %v947, %v1159
        %v1161 = vpop.f32.mrb[0].mxu0
        %v1162 = vpop.f32.mrb[0].mxu0
        %v1163 = vadd.f32 %v947, %v1162
        %v1164 = vpop.f32.mrb[0].mxu0
        %1165 = vmatprep.mubr.bf16.mxu0 0
        %1166 = vmatmul.mubr.bf16.gmra.mrb[0].mxu0 %v998
        %v1167 = vpop.f32.mrb[0].mxu0
        %v1168 = vadd.f32 %v947, %v1167
        %v1169 = vpop.f32.mrb[0].mxu0
        %v1170 = vpop.f32.mrb[0].mxu0
        %v1171 = vadd.f32 %v947, %v1170
        %v1172 = vpop.f32.mrb[0].mxu0
        %1173 = vmatprep.mubr.bf16.mxu0 0
        %1174 = vmatmul.mubr.bf16.gmra.mrb[0].mxu0 %v1001
        %v1175 = vpop.f32.mrb[0].mxu0
        %v1176 = vadd.f32 %v947, %v1175
        %v1177 = vpop.f32.mrb[0].mxu0
        %v1178 = vpop.f32.mrb[0].mxu0
        %v1179 = vadd.f32 %v947, %v1178
        %v1180 = vpop.f32.mrb[0].mxu0
        %1181 = vmatprep.mubr.bf16.mxu0 0
        %1182 = vmatmul.mubr.bf16.gmra.mrb[0].mxu0 %v1004
        %v1183 = vpop.f32.mrb[0].mxu0
        %v1184 = vadd.f32 %v947, %v1183
        %v1185 = vpop.f32.mrb[0].mxu0
        %v1186 = vpop.f32.mrb[0].mxu0
        %v1187 = vadd.f32 %v947, %v1186
        %v1188 = vpop.f32.mrb[0].mxu0
        %1189 = vmatprep.mubr.bf16.mxu0 0
        %1190 = vmatmul.mubr.bf16.gmra.mrb[0].mxu0 %v1007
        %v1191 = vpop.f32.mrb[0].mxu0
        %v1192 = vadd.f32 %v947, %v1191
        %v1193 = vpop.f32.mrb[0].mxu0
        %v1194 = vpop.f32.mrb[0].mxu0
        %v1195 = vadd.f32 %v947, %v1194
        %v1196 = vpop.f32.mrb[0].mxu0
        %1197 = vmatprep.mubr.bf16.mxu0 0
        %1198 = vmatmul.mubr.bf16.gmra.mrb[0].mxu0 %v1010
        %v1199 = vpop.f32.mrb[0].mxu0
        %v1200 = vadd.f32 %v947, %v1199
        %v1201 = vpop.f32.mrb[0].mxu0
        %v1202 = vpop.f32.mrb[0].mxu0
        %v1203 = vadd.f32 %v947, %v1202
        %v1204 = vpop.f32.mrb[0].mxu0
        %1205 = vmatprep.mubr.bf16.mxu0 0
        %1206 = vmatmul.mubr.bf16.gmra.mrb[0].mxu0 %v1013
        %v1207 = vpop.f32.mrb[0].mxu0
        %v1208 = vadd.f32 %v947, %v1207
        %v1209 = vpop.f32.mrb[0].mxu0
        %v1210 = vpop.f32.mrb[0].mxu0
        %v1211 = vadd.f32 %v947, %v1210
        %v1212 = vpop.f32.mrb[0].mxu0
        %1213 = vmatprep.mubr.bf16.mxu0 0
        %1214 = vmatmul.mubr.bf16.gmra.mrb[0].mxu0 %v1016
        %v1215 = vpop.f32.mrb[0].mxu0
        %v1216 = vadd.f32 %v947, %v1215
        %v1217 = vpop.f32.mrb[0].mxu0
        %v1218 = vpop.f32.mrb[0].mxu0
        %v1219 = vadd.f32 %v947, %v1218
        %v1220 = vpop.f32.mrb[0].mxu0
        %1221 = vmatprep.mubr.bf16.mxu0 0
        %1222 = vmatmul.mubr.bf16.gmra.mrb[0].mxu0 %v1019
        %v1223 = vpop.f32.mrb[0].mxu0
        %v1224 = vadd.f32 %v947, %v1223
        %v1225 = vpop.f32.mrb[0].mxu0
        %v1226 = vpop.f32.mrb[0].mxu0
        %v1227 = vadd.f32 %v947, %v1226
        %v1228 = vpop.f32.mrb[0].mxu0
        %1229 = vmatprep.mubr.bf16.mxu0 0
        %1230 = vmatmul.mubr.bf16.gmra.mrb[0].mxu0 %v1022
        %v1231 = vpop.f32.mrb[0].mxu0
        %v1232 = vadd.f32 %v947, %v1231
        %v1233 = vpop.f32.mrb[0].mxu0
        %v1234 = vpop.f32.mrb[0].mxu0
        %v1235 = vadd.f32 %v947, %v1234
        %v1236 = vpop.f32.mrb[0].mxu0
        %1237 = vmatprep.mubr.bf16.mxu0 0
        %1238 = vmatmul.mubr.bf16.gmra.mrb[0].mxu0 %v1025
        %v1239 = vpop.f32.mrb[0].mxu0
        %v1240 = vadd.f32 %v947, %v1239
        %v1241 = vpop.f32.mrb[0].mxu0
        %v1242 = vpop.f32.mrb[0].mxu0
        %v1243 = vadd.f32 %v947, %v1242
        %v1244 = vpop.f32.mrb[0].mxu0
        %1245 = vmatprep.mubr.bf16.mxu0 0
        %1246 = vmatmul.mubr.bf16.gmra.mrb[0].mxu0 %v1028
        %v1247 = vpop.f32.mrb[0].mxu0
        %v1248 = vadd.f32 %v947, %v1247
        %v1249 = vpop.f32.mrb[0].mxu0
        %v1250 = vpop.f32.mrb[0].mxu0
        %v1251 = vadd.f32 %v947, %v1250
        %v1252 = vpop.f32.mrb[0].mxu0
        %1253 = vmatprep.mubr.bf16.mxu0 0
        %1254 = vmatmul.mubr.bf16.gmra.mrb[0].mxu0 %v1031
        %v1255 = vpop.f32.mrb[0].mxu0
        %v1256 = vadd.f32 %v947, %v1255
        %v1257 = vpop.f32.mrb[0].mxu0
        %v1258 = vpop.f32.mrb[0].mxu0
        %v1259 = vadd.f32 %v947, %v1258
        %v1260 = vpop.f32.mrb[0].mxu0
        %1261 = vmatprep.mubr.bf16.mxu0 0
        %1262 = vmatmul.mubr.bf16.gmra.mrb[0].mxu0 %v1034
        %v1263 = vpop.f32.mrb[0].mxu0
        %v1264 = vadd.f32 %v947, %v1263
        %v1265 = vpop.f32.mrb[0].mxu0
        %v1266 = vpop.f32.mrb[0].mxu0
        %v1267 = vadd.f32 %v947, %v1266
        %v1268 = vpop.f32.mrb[0].mxu0
        %1269 = vmatprep.mubr.bf16.mxu0 0
        %1270 = vmatmul.mubr.bf16.gmra.mrb[0].mxu0 %v1037
        %v1271 = vpop.f32.mrb[0].mxu0
        %v1272 = vadd.f32 %v947, %v1271
        %v1273 = vpop.f32.mrb[0].mxu0
        %v1274 = vpop.f32.mrb[0].mxu0
        %v1275 = vadd.f32 %v947, %v1274
        %v1276 = vpop.f32.mrb[0].mxu0
        %1277 = vmatprep.mubr.bf16.mxu0 0
        %1278 = vmatmul.mubr.bf16.gmra.mrb[0].mxu0 %v1040
        %v1279 = vpop.f32.mrb[0].mxu0
        %v1280 = vadd.f32 %v947, %v1279
        %v1281 = vpop.f32.mrb[0].mxu0
        %v1282 = vpop.f32.mrb[0].mxu0
        %v1283 = vadd.f32 %v947, %v1282
        %v1284 = vpop.f32.mrb[0].mxu0
        %1285 = vmatprep.mubr.bf16.mxu0 0
        %1286 = vmatmul.mubr.bf16.gmra.mrb[0].mxu0 %v1043
        %v1287 = vpop.f32.mrb[0].mxu0
        %v1288 = vadd.f32 %v947, %v1287
        %v1289 = vpop.f32.mrb[0].mxu0
        %v1290 = vpop.f32.mrb[0].mxu0
        %v1291 = vadd.f32 %v947, %v1290
        %v1292 = vpop.f32.mrb[0].mxu0
        %1293 = vmatprep.mubr.bf16.mxu0 0
        %1294 = vmatmul.mubr.bf16.gmra.mrb[0].mxu0 %v1046
        %v1295 = vpop.f32.mrb[0].mxu0
        %v1296 = vadd.f32 %v947, %v1295
        %v1297 = vpop.f32.mrb[0].mxu0
        %v1298 = vpop.f32.mrb[0].mxu0
        %v1299 = vadd.f32 %v947, %v1298
        %v1300 = vpop.f32.mrb[0].mxu0
        %1301 = vmatprep.mubr.bf16.mxu0 0
        %1302 = vmatmul.mubr.bf16.gmra.mrb[0].mxu0 %v1049
        %v1303 = vpop.f32.mrb[0].mxu0
        %v1304 = vadd.f32 %v947, %v1303
        %v1305 = vpop.f32.mrb[0].mxu0
        %v1306 = vpop.f32.mrb[0].mxu0
        %v1307 = vadd.f32 %v947, %v1306
        %v1308 = vpop.f32.mrb[0].mxu0
        %1309 = vmatprep.mubr.bf16.mxu0 0
        %1310 = vmatmul.mubr.bf16.gmra.mrb[0].mxu0 %v1052
        %v1311 = vpop.f32.mrb[0].mxu0
        %v1312 = vadd.f32 %v947, %v1311
        %v1313 = vpop.f32.mrb[0].mxu0
        %v1314 = vpop.f32.mrb[0].mxu0
        %v1315 = vadd.f32 %v947, %v1314
        %v1316 = vpop.f32.mrb[0].mxu0
        %1317 = vmatprep.mubr.bf16.mxu0 0
        %1318 = vmatmul.mubr.bf16.gmra.mrb[0].mxu0 %v1055
        %v1319 = vpop.f32.mrb[0].mxu0
        %v1320 = vadd.f32 %v947, %v1319
        %v1321 = vpop.f32.mrb[0].mxu0
        %v1322 = vpop.f32.mrb[0].mxu0
        %v1323 = vadd.f32 %v947, %v1322
        %v1324 = vpop.f32.mrb[0].mxu0
        %1325 = vmatprep.mubr.bf16.mxu0 0
        %1326 = vmatmul.mubr.bf16.gmra.mrb[0].mxu0 %v1058
        %v1327 = vpop.f32.mrb[0].mxu0
        %v1328 = vadd.f32 %v947, %v1327
        %v1329 = vpop.f32.mrb[0].mxu0
        %v1330 = vpop.f32.mrb[0].mxu0
        %v1331 = vadd.f32 %v947, %v1330
        %v1332 = vpop.f32.mrb[0].mxu0
        %1333 = vmatprep.mubr.bf16.mxu0 0
        %1334 = vmatmul.mubr.bf16.gmra.mrb[0].mxu0 %v1061
        %v1335 = vpop.f32.mrb[0].mxu0
        %v1336 = vadd.f32 %v947, %v1335
        %v1337 = vpop.f32.mrb[0].mxu0
        %v1338 = vpop.f32.mrb[0].mxu0
        %v1339 = vadd.f32 %v947, %v1338
        %v1340 = vpop.f32.mrb[0].mxu0
        %1341 = vmatprep.mubr.bf16.mxu0 0
        %1342 = vmatmul.mubr.bf16.gmra.mrb[0].mxu0 %v1064
        %v1343 = vpop.f32.mrb[0].mxu0
        %v1344 = vadd.f32 %v947, %v1343
        %v1345 = vpop.f32.mrb[0].mxu0
        %v1346 = vpop.f32.mrb[0].mxu0
        %v1347 = vadd.f32 %v947, %v1346
        %v1348 = vpop.f32.mrb[0].mxu0
        %1349 = vmatprep.mubr.bf16.mxu0 0
        %1350 = vmatmul.mubr.bf16.gmra.mrb[0].mxu0 %v1067
        %v1351 = vpop.f32.mrb[0].mxu0
        %v1352 = vadd.f32 %v947, %v1351
        %v1353 = vpop.f32.mrb[0].mxu0
        %v1354 = vpop.f32.mrb[0].mxu0
        %v1355 = vadd.f32 %v947, %v1354
        %v1356 = vpop.f32.mrb[0].mxu0
        %1357 = vdwg.mxu0
        %1358 = vst [vmem:[%s253] sm:$0xff] %v1104
        %1359 = vst [vmem:[%s253 + $0x8] sm:$0xff] %v1107
        %1360 = vst [vmem:[%s253 + $0x10] sm:$0xff] %v1112
        %1361 = vst [vmem:[%s253 + $0x18] sm:$0xff] %v1115
        %1362 = vst [vmem:[%s253 + $0x20] sm:$0xff] %v1120
        %1363 = vst [vmem:[%s253 + $0x28] sm:$0xff] %v1123
        %1364 = vst [vmem:[%s253 + $0x30] sm:$0xff] %v1128
        %1365 = vst [vmem:[%s253 + $0x38] sm:$0xff] %v1131
        %1366 = vst [vmem:[%s253 + $0x40] sm:$0xff] %v1136
        %1367 = vst [vmem:[%s253 + $0x48] sm:$0xff] %v1139
        %1368 = vst [vmem:[%s253 + $0x50] sm:$0xff] %v1144
        %1369 = vst [vmem:[%s253 + $0x58] sm:$0xff] %v1147
        %1370 = vst [vmem:[%s253 + $0x60] sm:$0xff] %v1152
        %1371 = vst [vmem:[%s253 + $0x68] sm:$0xff] %v1155
        %1372 = vst [vmem:[%s253 + $0x70] sm:$0xff] %v1160
        %1373 = vst [vmem:[%s253 + $0x78] sm:$0xff] %v1163
        %1374 = vst [vmem:[%s253 + $0x80] sm:$0xff] %v1168
        %1375 = vst [vmem:[%s253 + $0x88] sm:$0xff] %v1171
        %1376 = vst [vmem:[%s253 + $0x90] sm:$0xff] %v1176
        %1377 = vst [vmem:[%s253 + $0x98] sm:$0xff] %v1179
        %1378 = vst [vmem:[%s253 + $0xa0] sm:$0xff] %v1184
        %1379 = vst [vmem:[%s253 + $0xa8] sm:$0xff] %v1187
        %1380 = vst [vmem:[%s253 + $0xb0] sm:$0xff] %v1192
        %1381 = vst [vmem:[%s253 + $0xb8] sm:$0xff] %v1195
        %1382 = vst [vmem:[%s253 + $0xc0] sm:$0xff] %v1200
        %1383 = vst [vmem:[%s253 + $0xc8] sm:$0xff] %v1203
        %1384 = vst [vmem:[%s253 + $0xd0] sm:$0xff] %v1208
        %1385 = vst [vmem:[%s253 + $0xd8] sm:$0xff] %v1211
        %1386 = vst [vmem:[%s253 + $0xe0] sm:$0xff] %v1216
        %1387 = vst [vmem:[%s253 + $0xe8] sm:$0xff] %v1219
        %1388 = vst [vmem:[%s253 + $0xf0] sm:$0xff] %v1224
        %1389 = vst [vmem:[%s253 + $0xf8] sm:$0xff] %v1227
        %1390 = vst [vmem:[%s253 + $0x100] sm:$0xff] %v1232
        %1391 = vst [vmem:[%s253 + $0x108] sm:$0xff] %v1235
        %1392 = vst [vmem:[%s253 + $0x110] sm:$0xff] %v1240
        %1393 = vst [vmem:[%s253 + $0x118] sm:$0xff] %v1243
        %1394 = vst [vmem:[%s253 + $0x120] sm:$0xff] %v1248
        %1395 = vst [vmem:[%s253 + $0x128] sm:$0xff] %v1251
        %1396 = vst [vmem:[%s253 + $0x130] sm:$0xff] %v1256
        %1397 = vst [vmem:[%s253 + $0x138] sm:$0xff] %v1259
        %1398 = vst [vmem:[%s253 + $0x140] sm:$0xff] %v1264
        %1399 = vst [vmem:[%s253 + $0x148] sm:$0xff] %v1267
        %1400 = vst [vmem:[%s253 + $0x150] sm:$0xff] %v1272
        %1401 = vst [vmem:[%s253 + $0x158] sm:$0xff] %v1275
        %1402 = vst [vmem:[%s253 + $0x160] sm:$0xff] %v1280
        %1403 = vst [vmem:[%s253 + $0x168] sm:$0xff] %v1283
        %1404 = vst [vmem:[%s253 + $0x170] sm:$0xff] %v1288
        %1405 = vst [vmem:[%s253 + $0x178] sm:$0xff] %v1291
        %1406 = vst [vmem:[%s253 + $0x180] sm:$0xff] %v1296
        %1407 = vst [vmem:[%s253 + $0x188] sm:$0xff] %v1299
        %1408 = vst [vmem:[%s253 + $0x190] sm:$0xff] %v1304
        %1409 = vst [vmem:[%s253 + $0x198] sm:$0xff] %v1307
        %1410 = vst [vmem:[%s253 + $0x1a0] sm:$0xff] %v1312
        %1411 = vst [vmem:[%s253 + $0x1a8] sm:$0xff] %v1315
        %1412 = vst [vmem:[%s253 + $0x1b0] sm:$0xff] %v1320
        %1413 = vst [vmem:[%s253 + $0x1b8] sm:$0xff] %v1323
        %1414 = vst [vmem:[%s253 + $0x1c0] sm:$0xff] %v1328
        %1415 = vst [vmem:[%s253 + $0x1c8] sm:$0xff] %v1331
        %1416 = vst [vmem:[%s253 + $0x1d0] sm:$0xff] %v1336
        %1417 = vst [vmem:[%s253 + $0x1d8] sm:$0xff] %v1339
        %1418 = vst [vmem:[%s253 + $0x1e0] sm:$0xff] %v1344
        %1419 = vst [vmem:[%s253 + $0x1e8] sm:$0xff] %v1347
        %1420 = vst [vmem:[%s253 + $0x1f0] sm:$0xff] %v1352
        %1421 = vst [vmem:[%s253 + $0x1f8] sm:$0xff] %v1355
        %s1422 = smul.u32 64, %s21
        %p1423 = scmp.lt.s32.totalorder %s1422, 127
        %s1424 = scalar_select %p1423, %s1422, 127
        %s1425 = smul.addr %s1424, 8
        %s1426 = scalar_lea.vmem %s5, %s1425
        %s1427 = sand.u32 %s165, 1
        %s1428 = scalar_lea.sflag [#allocation3], %s1427
        %s1429 = sand.u32 %s165, 1
        %s1430 = smul.addr %s1429, 512
        %s1431 = scalar_lea.vmem [#allocation2], %s1430
        // Predicated region
        $region41: #{multitask_forward.1} parent=39 // pred_check
          %p1432 = pneg %p149
        $region42: #{multitask_forward.1} parent=39 // pred_check_branch
          %1434 = sbr.rel (%p1432) target = $region44
        $region43: #{multitask_forward.1} parent=39 // pred_region
          %s1435 = smul.u32 64, %s21
        $region44: #{multitask_forward.1} parent=39 // pred_fallthru
          _
        // Predicated region
        $region45: #{multitask_forward.1} parent=39 // pred_check
          %p1436 = pneg %p175
        $region46: #{multitask_forward.1} parent=39 // pred_check_branch
          %1438 = sbr.rel (%p1436) target = $region48
        $region47: #{multitask_forward.1} parent=39 // pred_region
          %s1439 = smul.u32 64, %s21
          %s1441 = ssub.s32 8192, 8192
          %1442 = vsyncadd %s1428, %s1441
          %s1443 = smul.addr %s1439, 128
          %s1444 = scalar_lea.hbm %s6, %s1443
          %s1445 = sshll.u32 %s1431, 4
          %s1446 = int_to_ptr.vmem [resolvable:$true] %s1445
          %1451 = dma.vmem_to_hbm [thread:$0]  %s1446, 8192, %s1444, %s1428, 128, 128, 8
        $region48: #{multitask_forward.1} parent=39 // pred_fallthru
          _
      $region40: #{multitask_forward.1} parent=5 // pred_fallthru
        _
      %p1452 = scmp.le.s32.totalorder 2, %s16
      // Predicated region
      $region49: #{multitask_forward.1} parent=5 // pred_check
        %p1453 = pneg %p1452
      $region50: #{multitask_forward.1} parent=5 // pred_check_branch
        %1455 = sbr.rel (%p1453) target = $region52
      $region51: #{multitask_forward.1} parent=5 // pred_region
        %s1456 = ssub.s32 %s16, 2
        // Predicated region
        $region53: #{multitask_forward.1} parent=51 // pred_check
          %p1457 = pneg %p155
        $region54: #{multitask_forward.1} parent=51 // pred_check_branch
          %1459 = sbr.rel (%p1457) target = $region56
        $region55: #{multitask_forward.1} parent=51 // pred_region
          %s1460 = smul.u32 64, %s22
          %p1461 = scmp.lt.s32.totalorder %s1460, 127
          %s1462 = scalar_select %p1461, %s1460, 127
          %s1463 = smul.addr %s1462, 8
          %s1464 = scalar_lea.vmem %s5, %s1463
        $region56: #{multitask_forward.1} parent=51 // pred_fallthru
          _
        // Predicated region
        $region57: #{multitask_forward.1} parent=51 // pred_check
          %p1465 = pneg %p181
        $region58: #{multitask_forward.1} parent=51 // pred_check_branch
          %1467 = sbr.rel (%p1465) target = $region60
        $region59: #{multitask_forward.1} parent=51 // pred_region
          %s1468 = sand.u32 %s166, 1
          %s1469 = scalar_lea.sflag [#allocation3], %s1468
          %s1470 = sand.u32 %s166, 1
          %s1471 = smul.addr %s1470, 512
          %s1472 = scalar_lea.vmem [#allocation2], %s1471
          %1473 = dma.done %s1469, 8192
        $region60: #{multitask_forward.1} parent=51 // pred_fallthru
          _
      $region52: #{multitask_forward.1} parent=5 // pred_fallthru
        _
    $region6: #{multitask_forward.1} parent=1 // loop_footer
      %s20 = sadd.s32 1, %s16
    $region7: #{multitask_forward.1} parent=1 // loop_footer_branch
      %15 = sbr.rel target = $region3
    $region8: #{multitask_forward.1} parent=1 // loop_exit
      _
    %1474 = vsyncpa [#allocation3], 1
    %s1475 = scalar_lea.sflag [#allocation3], 1
    %1476 = vsyncpa %s1475, 1

</llo_original>
